<compile_context>
chip_gen: v7x
topology: tpu7x:2x2x1
jax: 0.10.0
libtpu: 0.0.40
codegen_flags: <defaults>
</compile_context>

<pallas_src>
import jax
import jax.numpy as jnp
from jax.experimental import pallas as pl
from jax.experimental.pallas import tpu as pltpu


def _make_kernel(dn: int, de: int, hidden: int):
    """Fused edge-update + node-message + scatter kernel (feature-major)."""

    def kernel(e_ref, rbf_ref, src_row_ref, dst_row_ref, nfeat_ref,
               e_w1, e_b1, e_wl2, e_bl2, e_wg2, e_bg2,
               n_w1, n_b1, n_wl2, n_bl2, n_wg2, n_bg2,
               ww_ref,
               e_out_ref, v_out_ref,
               x_stack, iota_scr):
        i = pl.program_id(1)              # inner edge-tile ("arbitrary") axis

        @pl.when(i == 0)
        def _():
            # Per-shard init: zero the partial node accumulator and fill the
            # grid-invariant iota scratch once (reused every tile).
            v_out_ref[...] = jnp.zeros_like(v_out_ref)
            iota_scr[...] = jax.lax.broadcasted_iota(jnp.int32,
                                                     iota_scr.shape, 0)

        e_t = e_ref[...]                  # (de, T)      feature-major edge tile
        rbf_t = rbf_ref[...]              # (degree, T)
        src_row = src_row_ref[...]        # (1, T) int32
        dst_row = dst_row_ref[...]        # (1, T) int32
        nfeat = nfeat_ref[...]            # (dn, N)      resident node features
        iota_nt = iota_scr[...]           # (N, T)

        # In-kernel one-hots. Padded edges carry index == N, so their columns
        # are all zero (no gather, no scatter contribution).
        oh_src = (iota_nt == src_row).astype(jnp.float32)       # (N, T)
        oh_dst = (iota_nt == dst_row).astype(jnp.float32)       # (N, T)

        # Gathers vi = v[src], vj = v[dst] (feature-major, canonical matmuls).
        # NOTE: runs at default MXU matmul precision; set precision=HIGHEST
        # here if bit-exactness vs. node_feat[src] is required.
        vi = jnp.dot(nfeat, oh_src, preferred_element_type=jnp.float32)  # (dn,T)
        vj = jnp.dot(nfeat, oh_dst, preferred_element_type=jnp.float32)  # (dn,T)

        # Fused rbf weighting: [e_ww | n_ww]^T @ rbf, then sublane-slice.
        # (ww is bias-free, so zero-padded rbf rows give exactly zero here.)
        rbf_w = jnp.dot(ww_ref[...], rbf_t, preferred_element_type=jnp.float32)
        rbf_we = rbf_w[0:de, :]                                  # (de, T)
        rbf_wn = rbf_w[de:de + dn, :]                            # (dn, T)

        # Stack [vi; vj; e] once; both branches read the stack and only the e
        # slice changes between them -> a single K=(2dn+de) first-layer matmul
        # per branch instead of three tiny-K pushes.
        x_stack[0:dn, :] = vi
        x_stack[dn:2 * dn, :] = vj
        x_stack[2 * dn:2 * dn + de, :] = e_t

        def gated(w1, b1, wl2, bl2, wg2, bg2):
            # Fused first layer of the "layers" and "gates" MLPs ([wl1|wg1]).
            h = jax.nn.silu(
                jnp.dot(w1[...], x_stack[...],
                        preferred_element_type=jnp.float32) + b1[...])
            hl = h[0:hidden, :]
            hg = h[hidden:2 * hidden, :]
            out_l = jax.nn.silu(
                jnp.dot(wl2[...], hl, preferred_element_type=jnp.float32)
                + bl2[...])
            out_g = jax.nn.sigmoid(
                jnp.dot(wg2[...], hg, preferred_element_type=jnp.float32)
                + bg2[...])
            return out_l * out_g

        # --- edge update (Eq. 4) ---
        e_new = e_t + gated(e_w1, e_b1, e_wl2, e_bl2, e_wg2, e_bg2) * rbf_we
        e_out_ref[...] = e_new                         # lane-dense store

        # --- node messages (Eq. 5), using UPDATED edge features ---
        x_stack[2 * dn:2 * dn + de, :] = e_new         # reuse vi/vj slices
        mess = gated(n_w1, n_b1, n_wl2, n_bl2, n_wg2, n_bg2) * rbf_wn  # (dn,T)

        # Scatter-sum to destination nodes by contracting the edge (lane) axis
        # of BOTH operands, reusing oh_dst (no third one-hot, no extra index
        # stream): contrib[d, n] = sum_t mess[d, t] * oh_dst[n, t]
        contrib = jax.lax.dot_general(mess, oh_dst, (((1,), (1,)), ((), ())),
                                      preferred_element_type=jnp.float32)
        v_out_ref[...] += contrib                      # (dn, N) partial

    return kernel


def prepare_weights(params, dn: int, de: int):
    """Weights in kernel layout ([out, in], f32).

    Call once per model; the returned list can be reused across stacked
    DIEPBlock invocations (constants under jit).
    """
    def branch(prefix):
        w1 = jnp.concatenate([params[f"{prefix}_wl1"],
                              params[f"{prefix}_wg1"]],
                             axis=1).T.astype(jnp.float32)   # (2h, 2dn+de)
        b1 = jnp.concatenate([params[f"{prefix}_bl1"],
                              params[f"{prefix}_bg1"]],
                             axis=1).T.astype(jnp.float32)   # (2h, 1)
        return [w1, b1,
                params[f"{prefix}_wl2"].T.astype(jnp.float32),
                params[f"{prefix}_bl2"].T.astype(jnp.float32),
                params[f"{prefix}_wg2"].T.astype(jnp.float32),
                params[f"{prefix}_bg2"].T.astype(jnp.float32)]

    # edge/node weight funcs are bias-free nn.Linear layers; the padded-edge
    # zeroing below relies on that (zero rbf rows -> zero weighting).
    ww_fused = jnp.concatenate([params["e_ww"], params["n_ww"]],
                               axis=1).T.astype(jnp.float32)  # (de+dn, degree)
    return branch("e") + branch("n") + [ww_fused]


def diep_block_forward_fm(src, dst, e_fm, v_fm, rbf_fm, weights, *,
                          tile_e: int = 512, num_shards: int = 1,
                          vmem_limit_bytes=None):
    """Feature-major DIEPGraphConv forward (include_state=False).

    e_fm: (de, E), v_fm: (dn, N), rbf_fm: (degree, E).  Keep this layout
    across stacked blocks and transpose only at the model boundary.
    Returns (e_new_fm, v_new_fm) in the same layout.

    num_shards: leading "parallel" grid axis (set 2 on v7x to use both
    TensorCores); tile_e: edge-tile width (multiple of 128; raise to 1024-2048
    on v5e/v6e together with vmem_limit_bytes, cap ~512-1024 on v7x).
    """
    de, E = e_fm.shape
    dn, N = v_fm.shape
    hidden = weights[0].shape[0] // 2
    assert tile_e % 128 == 0, "tile_e must be a multiple of the 128-lane width"
    assert de % 8 == 0 and dn % 8 == 0 and hidden % 8 == 0, (
        "de/dn/hidden must be multiples of 8 for copy-free sublane slices")
    assert weights[0].shape[1] == 2 * dn + de, "first-layer weight shape mismatch"

    tiles = pl.cdiv(E, tile_e)
    tiles_per_shard = pl.cdiv(tiles, num_shards)
    E_pad = num_shards * tiles_per_shard * tile_e
    pad = E_pad - E

    # --- glue: pad ragged edge count on the lane axis (already feature-major)
    e_p = jnp.pad(e_fm.astype(jnp.float32), ((0, 0), (0, pad)))
    rbf_p = jnp.pad(rbf_fm.astype(jnp.float32), ((0, 0), (0, pad)))
    nfeat = v_fm.astype(jnp.float32)
    src_row = jnp.pad(src.astype(jnp.int32), (0, pad),
                      constant_values=N).reshape(1, E_pad)
    dst_row = jnp.pad(dst.astype(jnp.int32), (0, pad),
                      constant_values=N).reshape(1, E_pad)

    def edge_tiled(rows):
        return pl.BlockSpec((rows, tile_e),
                            lambda s, i: (0, s * tiles_per_shard + i))

    def resident(a):   # grid-invariant full block (weights, node features)
        return pl.BlockSpec(a.shape, lambda s, i: (0,) * a.ndim)

    in_specs = ([edge_tiled(de), edge_tiled(rbf_p.shape[0]),
                 edge_tiled(1), edge_tiled(1), resident(nfeat)]
                + [resident(w) for w in weights])

    out_shape = (jax.ShapeDtypeStruct((de, E_pad), jnp.float32),
                 jax.ShapeDtypeStruct((num_shards, dn, N), jnp.float32))
    out_specs = (
        pl.BlockSpec((de, tile_e), lambda s, i: (0, s * tiles_per_shard + i)),
        # per-shard resident partial accumulator (squeezed leading dim)
        pl.BlockSpec((None, dn, N), lambda s, i: (s, 0, 0)),
    )

    e_out, v_parts = pl.pallas_call(
        _make_kernel(dn, de, hidden),
        out_shape=out_shape,
        grid_spec=pltpu.PrefetchScalarGridSpec(
            num_scalar_prefetch=0,
            grid=(num_shards, tiles_per_shard),
            in_specs=in_specs,
            out_specs=out_specs,
            scratch_shapes=[pltpu.VMEM((2 * dn + de, tile_e), jnp.float32),
                            pltpu.VMEM((N, tile_e), jnp.int32)]),
        compiler_params=pltpu.CompilerParams(
            dimension_semantics=("parallel", "arbitrary"),
            vmem_limit_bytes=vmem_limit_bytes),
    )(e_p, rbf_p, src_row, dst_row, nfeat, *weights)

    e_new_fm = e_out[:, :E]
    v_new_fm = nfeat + jnp.sum(v_parts, axis=0)     # residual + shard partials
    return e_new_fm, v_new_fm


def diep_block_forward(src, dst, edge_feat, node_feat, state_feat, rbf, params,
                       *, tile_e: int = 512, num_shards: int = 1,
                       vmem_limit_bytes=None):
    """DIEPBlock forward (include_state=False, dropout=None), standard layout.

    For stacks of blocks prefer diep_block_forward_fm and keep the
    feature-major layout between blocks (saves two HBM-level transposes of the
    big edge tensor per block).
    """
    dn = node_feat.shape[1]
    de = edge_feat.shape[1]
    weights = prepare_weights(params, dn, de)
    e_fm, v_fm = diep_block_forward_fm(
        src, dst, edge_feat.T, node_feat.T, rbf.T, weights,
        tile_e=tile_e, num_shards=num_shards,
        vmem_limit_bytes=vmem_limit_bytes)
    # include_state=False: state features pass through unchanged.
    # TODO(synk): state_update_func (Eq. 6) / Dropout not exercised (include_state=False, dropout=None).
    return e_fm.T, v_fm.T, state_feat


def init_params(key, din, hidden, de, dn, degree):
    """Deterministic synthetic parameters ([in, out] layout, biases (1, out))."""
    ks = iter(jax.random.split(key, 18))

    def lin(i, o):
        return jax.random.normal(next(ks), (i, o), jnp.float32) * 0.1

    def bias(o):
        return jax.random.normal(next(ks), (1, o), jnp.float32) * 0.1

    p = {}
    for pre, out_dim in (("e", de), ("n", dn)):
        p[f"{pre}_wl1"] = lin(din, hidden)
        p[f"{pre}_bl1"] = bias(hidden)
        p[f"{pre}_wl2"] = lin(hidden, out_dim)
        p[f"{pre}_bl2"] = bias(out_dim)
        p[f"{pre}_wg1"] = lin(din, hidden)
        p[f"{pre}_bg1"] = bias(hidden)
        p[f"{pre}_wg2"] = lin(hidden, out_dim)
        p[f"{pre}_bg2"] = bias(out_dim)
        p[f"{pre}_ww"] = lin(degree, out_dim)   # edge/node weight func (no bias)
    return p


def reference(src, dst, edge_feat, node_feat, state_feat, rbf, p):
    """Pure-JAX reference matching the PyTorch forward semantics."""

    def gated(x, wl1, bl1, wl2, bl2, wg1, bg1, wg2, bg2):
        l = jax.nn.silu(jax.nn.silu(x @ wl1 + bl1) @ wl2 + bl2)
        g = jax.nn.sigmoid(jax.nn.silu(x @ wg1 + bg1) @ wg2 + bg2)
        return l * g

    vi = node_feat[src]
    vj = node_feat[dst]
    x = jnp.concatenate([vi, vj, edge_feat], axis=-1)
    e_upd = gated(x, p["e_wl1"], p["e_bl1"], p["e_wl2"], p["e_bl2"],
                  p["e_wg1"], p["e_bg1"], p["e_wg2"], p["e_bg2"]) * (rbf @ p["e_ww"])
    e_new = edge_feat + e_upd
    xn = jnp.concatenate([vi, vj, e_new], axis=-1)
    mess = gated(xn, p["n_wl1"], p["n_bl1"], p["n_wl2"], p["n_bl2"],
                 p["n_wg1"], p["n_bg1"], p["n_wg2"], p["n_bg2"]) * (rbf @ p["n_ww"])
    v_new = node_feat + jax.ops.segment_sum(mess, dst,
                                            num_segments=node_feat.shape[0])
    return e_new, v_new, state_feat


if __name__ == "__main__":
    key = jax.random.PRNGKey(0)
    N, E = 16, 200                       # nodes, edges (E not a tile multiple)
    dn, de, degree, hidden = 16, 16, 8, 32

    ks = jax.random.split(key, 6)
    src = jax.random.randint(ks[0], (E,), 0, N)
    dst = jax.random.randint(ks[1], (E,), 0, N)
    node_feat = jax.random.normal(ks[2], (N, dn), jnp.float32)
    edge_feat = jax.random.normal(ks[3], (E, de), jnp.float32)
    rbf = jax.random.normal(ks[4], (E, degree), jnp.float32)
    state_feat = jnp.zeros((1, 4), jnp.float32)   # unused (include_state=False)

    params = init_params(ks[5], 2 * dn + de, hidden, de, dn, degree)

    # Small shapes -> small tile; num_shards=2 exercises the parallel-shard
    # path (uses both TensorCores on v7x, just serializes on v5e/v6e).
    # Production: tile_e=512-1024 (v7x) / 1024-2048 (v5e/v6e with raised
    # vmem_limit_bytes).
    e_out, v_out, s_out = diep_block_forward(src, dst, edge_feat, node_feat,
                                             state_feat, rbf, params,
                                             tile_e=128, num_shards=2)
    jax.block_until_ready((e_out, v_out, s_out))

    e_ref, v_ref, _ = reference(src, dst, edge_feat, node_feat, state_feat,
                                rbf, params)
    assert jnp.allclose(e_out, e_ref, atol=1e-4, rtol=1e-4), "edge feat mismatch"
    assert jnp.allclose(v_out, v_ref, atol=1e-4, rtol=1e-4), "node feat mismatch"

    print("KERNEL_OK")
</pallas_src>

<mosaic_0001>
module attributes {stable_mosaic.version = 11 : i64} {
  func.func @kernel(%arg0: i32, %arg1: i32, %arg2: memref<16x128xf32, #tpu.memory_space<vmem>>, %arg3: memref<8x128xf32, #tpu.memory_space<vmem>>, %arg4: memref<1x128xi32, #tpu.memory_space<vmem>>, %arg5: memref<1x128xi32, #tpu.memory_space<vmem>>, %arg6: memref<16x16xf32, #tpu.memory_space<vmem>>, %arg7: memref<64x48xf32, #tpu.memory_space<vmem>>, %arg8: memref<64x1xf32, #tpu.memory_space<vmem>>, %arg9: memref<16x32xf32, #tpu.memory_space<vmem>>, %arg10: memref<16x1xf32, #tpu.memory_space<vmem>>, %arg11: memref<16x32xf32, #tpu.memory_space<vmem>>, %arg12: memref<16x1xf32, #tpu.memory_space<vmem>>, %arg13: memref<64x48xf32, #tpu.memory_space<vmem>>, %arg14: memref<64x1xf32, #tpu.memory_space<vmem>>, %arg15: memref<16x32xf32, #tpu.memory_space<vmem>>, %arg16: memref<16x1xf32, #tpu.memory_space<vmem>>, %arg17: memref<16x32xf32, #tpu.memory_space<vmem>>, %arg18: memref<16x1xf32, #tpu.memory_space<vmem>>, %arg19: memref<32x8xf32, #tpu.memory_space<vmem>>, %arg20: memref<16x128xf32, #tpu.memory_space<vmem>>, %arg21: memref<1x16x16xf32, #tpu.memory_space<vmem>>, %arg22: memref<48x128xf32, #tpu.memory_space<vmem>>, %arg23: memref<16x128xi32, #tpu.memory_space<vmem>>) attributes {dimension_semantics = [#tpu.dimension_semantics<parallel>, #tpu.dimension_semantics<arbitrary>], iteration_bounds = array<i64: 2, 1>, scalar_prefetch = 0 : i64, scratch_operands = 2 : i64, tpu.core_type = #tpu.core_type<tc>, window_params = [{transform_indices = @transform_0, window_bounds = array<i64: 16, 128>}, {transform_indices = @transform_1, window_bounds = array<i64: 8, 128>}, {transform_indices = @transform_2, window_bounds = array<i64: 1, 128>}, {transform_indices = @transform_3, window_bounds = array<i64: 1, 128>}, {pipeline_mode = #tpu.pipeline_mode<synchronous>, transform_indices = @transform_4, window_bounds = array<i64: 16, 16>}, {pipeline_mode = #tpu.pipeline_mode<synchronous>, transform_indices = @transform_5, window_bounds = array<i64: 64, 48>}, {pipeline_mode = #tpu.pipeline_mode<synchronous>, transform_indices = @transform_6, window_bounds = array<i64: 64, 1>}, {pipeline_mode = #tpu.pipeline_mode<synchronous>, transform_indices = @transform_7, window_bounds = array<i64: 16, 32>}, {pipeline_mode = #tpu.pipeline_mode<synchronous>, transform_indices = @transform_8, window_bounds = array<i64: 16, 1>}, {pipeline_mode = #tpu.pipeline_mode<synchronous>, transform_indices = @transform_9, window_bounds = array<i64: 16, 32>}, {pipeline_mode = #tpu.pipeline_mode<synchronous>, transform_indices = @transform_10, window_bounds = array<i64: 16, 1>}, {pipeline_mode = #tpu.pipeline_mode<synchronous>, transform_indices = @transform_11, window_bounds = array<i64: 64, 48>}, {pipeline_mode = #tpu.pipeline_mode<synchronous>, transform_indices = @transform_12, window_bounds = array<i64: 64, 1>}, {pipeline_mode = #tpu.pipeline_mode<synchronous>, transform_indices = @transform_13, window_bounds = array<i64: 16, 32>}, {pipeline_mode = #tpu.pipeline_mode<synchronous>, transform_indices = @transform_14, window_bounds = array<i64: 16, 1>}, {pipeline_mode = #tpu.pipeline_mode<synchronous>, transform_indices = @transform_15, window_bounds = array<i64: 16, 32>}, {pipeline_mode = #tpu.pipeline_mode<synchronous>, transform_indices = @transform_16, window_bounds = array<i64: 16, 1>}, {pipeline_mode = #tpu.pipeline_mode<synchronous>, transform_indices = @transform_17, window_bounds = array<i64: 32, 8>}, {transform_indices = @transform_18, window_bounds = array<i64: 16, 128>}, {transform_indices = @transform_19, window_bounds = array<i64: 1, 16, 16>}]} {
    %c0_i32 = arith.constant 0 : i32
    %0 = arith.cmpi eq, %arg1, %c0_i32 : i32
    %1 = arith.extui %0 : i1 to i32
    %c0_i32_0 = arith.constant 0 : i32
    %2 = arith.cmpi ne, %1, %c0_i32_0 : i32
    scf.if %2 {
      %cst_71 = arith.constant 0.000000e+00 : f32
      %110 = vector.broadcast %cst_71 : f32 to vector<16x16xf32>
      %c0_72 = arith.constant 0 : index
      %c0_73 = arith.constant 0 : index
      %c0_74 = arith.constant 0 : index
      %111 = vector.load %arg21[%c0_72, %c0_73, %c0_74] : memref<1x16x16xf32, #tpu.memory_space<vmem>>, vector<1x16x16xf32>
      %112 = vector.shape_cast %111 : vector<1x16x16xf32> to vector<16x16xf32>
      %113 = vector.shape_cast %110 : vector<16x16xf32> to vector<1x16x16xf32>
      tpu.vector_store %arg21[%c0_72, %c0_73, %c0_74], %113 {strides = array<i32>} : memref<1x16x16xf32, #tpu.memory_space<vmem>>, vector<1x16x16xf32>,
      %114 = tpu.iota {dimensions = array<i32: 0>} : vector<16x128xi32>
      %c0_75 = arith.constant 0 : index
      %c0_76 = arith.constant 0 : index
      %115 = vector.load %arg23[%c0_75, %c0_76] : memref<16x128xi32, #tpu.memory_space<vmem>>, vector<16x128xi32>
      tpu.vector_store %arg23[%c0_75, %c0_76], %114 {strides = array<i32>} : memref<16x128xi32, #tpu.memory_space<vmem>>, vector<16x128xi32>,
    } else {
    }
    %c0 = arith.constant 0 : index
    %c0_1 = arith.constant 0 : index
    %3 = vector.load %arg2[%c0, %c0_1] : memref<16x128xf32, #tpu.memory_space<vmem>>, vector<16x128xf32>
    %c0_2 = arith.constant 0 : index
    %c0_3 = arith.constant 0 : index
    %4 = vector.load %arg3[%c0_2, %c0_3] : memref<8x128xf32, #tpu.memory_space<vmem>>, vector<8x128xf32>
    %c0_4 = arith.constant 0 : index
    %c0_5 = arith.constant 0 : index
    %5 = vector.load %arg4[%c0_4, %c0_5] : memref<1x128xi32, #tpu.memory_space<vmem>>, vector<1x128xi32>
    %c0_6 = arith.constant 0 : index
    %c0_7 = arith.constant 0 : index
    %6 = vector.load %arg5[%c0_6, %c0_7] : memref<1x128xi32, #tpu.memory_space<vmem>>, vector<1x128xi32>
    %c0_8 = arith.constant 0 : index
    %c0_9 = arith.constant 0 : index
    %7 = vector.load %arg6[%c0_8, %c0_9] : memref<16x16xf32, #tpu.memory_space<vmem>>, vector<16x16xf32>
    %c0_10 = arith.constant 0 : index
    %c0_11 = arith.constant 0 : index
    %8 = vector.load %arg23[%c0_10, %c0_11] : memref<16x128xi32, #tpu.memory_space<vmem>>, vector<16x128xi32>
    %9 = vector.broadcast %5 : vector<1x128xi32> to vector<16x128xi32>
    %10 = arith.cmpi eq, %8, %9 : vector<16x128xi32>
    %11 = arith.extui %10 : vector<16x128xi1> to vector<16x128xi32>
    %12 = arith.sitofp %11 : vector<16x128xi32> to vector<16x128xf32>
    %13 = vector.broadcast %6 : vector<1x128xi32> to vector<16x128xi32>
    %14 = arith.cmpi eq, %8, %13 : vector<16x128xi32>
    %15 = arith.extui %14 : vector<16x128xi1> to vector<16x128xi32>
    %16 = arith.sitofp %15 : vector<16x128xi32> to vector<16x128xf32>
    %cst = arith.constant dense<0.000000e+00> : vector<16x128xf32>
    %17 = tpu.matmul %7, %12, %cst {dimension_numbers = #tpu.dot_dimension_numbers<[1], [0], [0], [1], [0, 0, 1, 1], [], []>} : vector<16x16xf32>, vector<16x128xf32>, vector<16x128xf32> -> vector<16x128xf32>
    %cst_12 = arith.constant dense<0.000000e+00> : vector<16x128xf32>
    %18 = tpu.matmul %7, %16, %cst_12 {dimension_numbers = #tpu.dot_dimension_numbers<[1], [0], [0], [1], [0, 0, 1, 1], [], []>} : vector<16x16xf32>, vector<16x128xf32>, vector<16x128xf32> -> vector<16x128xf32>
    %c0_13 = arith.constant 0 : index
    %c0_14 = arith.constant 0 : index
    %19 = vector.load %arg19[%c0_13, %c0_14] : memref<32x8xf32, #tpu.memory_space<vmem>>, vector<32x8xf32>
    %cst_15 = arith.constant dense<0.000000e+00> : vector<32x128xf32>
    %20 = tpu.matmul %19, %4, %cst_15 {dimension_numbers = #tpu.dot_dimension_numbers<[1], [0], [0], [1], [0, 0, 1, 1], [], []>} : vector<32x8xf32>, vector<8x128xf32>, vector<32x128xf32> -> vector<32x128xf32>
    %21 = vector.extract_strided_slice %20 {offsets = [0, 0], sizes = [16, 128], strides = [1, 1]} : vector<32x128xf32> to vector<16x128xf32>
    %22 = vector.extract_strided_slice %20 {offsets = [16, 0], sizes = [16, 128], strides = [1, 1]} : vector<32x128xf32> to vector<16x128xf32>
    %c0_16 = arith.constant 0 : index
    %c0_17 = arith.constant 0 : index
    %23 = vector.load %arg22[%c0_16, %c0_17] : memref<48x128xf32, #tpu.memory_space<vmem>>, vector<16x128xf32>
    tpu.vector_store %arg22[%c0_16, %c0_17], %17 {strides = array<i32>} : memref<48x128xf32, #tpu.memory_space<vmem>>, vector<16x128xf32>,
    %c16 = arith.constant 16 : index
    %c0_18 = arith.constant 0 : index
    %24 = vector.load %arg22[%c16, %c0_18] : memref<48x128xf32, #tpu.memory_space<vmem>>, vector<16x128xf32>
    tpu.vector_store %arg22[%c16, %c0_18], %18 {strides = array<i32>} : memref<48x128xf32, #tpu.memory_space<vmem>>, vector<16x128xf32>,
    %c32 = arith.constant 32 : index
    %c0_19 = arith.constant 0 : index
    %25 = vector.load %arg22[%c32, %c0_19] : memref<48x128xf32, #tpu.memory_space<vmem>>, vector<16x128xf32>
    tpu.vector_store %arg22[%c32, %c0_19], %3 {strides = array<i32>} : memref<48x128xf32, #tpu.memory_space<vmem>>, vector<16x128xf32>,
    %c0_20 = arith.constant 0 : index
    %c0_21 = arith.constant 0 : index
    %26 = vector.load %arg7[%c0_20, %c0_21] : memref<64x48xf32, #tpu.memory_space<vmem>>, vector<64x48xf32>
    %c0_22 = arith.constant 0 : index
    %c0_23 = arith.constant 0 : index
    %27 = vector.load %arg22[%c0_22, %c0_23] : memref<48x128xf32, #tpu.memory_space<vmem>>, vector<48x128xf32>
    %cst_24 = arith.constant dense<0.000000e+00> : vector<64x128xf32>
    %28 = tpu.matmul %26, %27, %cst_24 {dimension_numbers = #tpu.dot_dimension_numbers<[1], [0], [0], [1], [0, 0, 1, 1], [], []>} : vector<64x48xf32>, vector<48x128xf32>, vector<64x128xf32> -> vector<64x128xf32>
    %c0_25 = arith.constant 0 : index
    %c0_26 = arith.constant 0 : index
    %29 = vector.load %arg8[%c0_25, %c0_26] : memref<64x1xf32, #tpu.memory_space<vmem>>, vector<64x1xf32>
    %30 = vector.broadcast %29 : vector<64x1xf32> to vector<64x128xf32>
    %31 = arith.addf %28, %30 : vector<64x128xf32>
    %32 = arith.negf %31 : vector<64x128xf32>
    %33 = math.exp %32 : vector<64x128xf32>
    %cst_27 = arith.constant 1.000000e+00 : f32
    %34 = vector.broadcast %cst_27 : f32 to vector<64x128xf32>
    %35 = arith.addf %34, %33 : vector<64x128xf32>
    %36 = arith.divf %34, %35 : vector<64x128xf32>
    %37 = arith.mulf %31, %36 : vector<64x128xf32>
    %38 = vector.extract_strided_slice %37 {offsets = [0, 0], sizes = [32, 128], strides = [1, 1]} : vector<64x128xf32> to vector<32x128xf32>
    %39 = vector.extract_strided_slice %37 {offsets = [32, 0], sizes = [32, 128], strides = [1, 1]} : vector<64x128xf32> to vector<32x128xf32>
    %c0_28 = arith.constant 0 : index
    %c0_29 = arith.constant 0 : index
    %40 = vector.load %arg9[%c0_28, %c0_29] : memref<16x32xf32, #tpu.memory_space<vmem>>, vector<16x32xf32>
    %cst_30 = arith.constant dense<0.000000e+00> : vector<16x128xf32>
    %41 = tpu.matmul %40, %38, %cst_30 {dimension_numbers = #tpu.dot_dimension_numbers<[1], [0], [0], [1], [0, 0, 1, 1], [], []>} : vector<16x32xf32>, vector<32x128xf32>, vector<16x128xf32> -> vector<16x128xf32>
    %c0_31 = arith.constant 0 : index
    %c0_32 = arith.constant 0 : index
    %42 = vector.load %arg10[%c0_31, %c0_32] : memref<16x1xf32, #tpu.memory_space<vmem>>, vector<16x1xf32>
    %43 = vector.broadcast %42 : vector<16x1xf32> to vector<16x128xf32>
    %44 = arith.addf %41, %43 : vector<16x128xf32>
    %45 = arith.negf %44 : vector<16x128xf32>
    %46 = math.exp %45 : vector<16x128xf32>
    %cst_33 = arith.constant 1.000000e+00 : f32
    %47 = vector.broadcast %cst_33 : f32 to vector<16x128xf32>
    %48 = arith.addf %47, %46 : vector<16x128xf32>
    %49 = arith.divf %47, %48 : vector<16x128xf32>
    %50 = arith.mulf %44, %49 : vector<16x128xf32>
    %c0_34 = arith.constant 0 : index
    %c0_35 = arith.constant 0 : index
    %51 = vector.load %arg11[%c0_34, %c0_35] : memref<16x32xf32, #tpu.memory_space<vmem>>, vector<16x32xf32>
    %cst_36 = arith.constant dense<0.000000e+00> : vector<16x128xf32>
    %52 = tpu.matmul %51, %39, %cst_36 {dimension_numbers = #tpu.dot_dimension_numbers<[1], [0], [0], [1], [0, 0, 1, 1], [], []>} : vector<16x32xf32>, vector<32x128xf32>, vector<16x128xf32> -> vector<16x128xf32>
    %c0_37 = arith.constant 0 : index
    %c0_38 = arith.constant 0 : index
    %53 = vector.load %arg12[%c0_37, %c0_38] : memref<16x1xf32, #tpu.memory_space<vmem>>, vector<16x1xf32>
    %54 = vector.broadcast %53 : vector<16x1xf32> to vector<16x128xf32>
    %55 = arith.addf %52, %54 : vector<16x128xf32>
    %56 = arith.negf %55 : vector<16x128xf32>
    %57 = math.exp %56 : vector<16x128xf32>
    %cst_39 = arith.constant 1.000000e+00 : f32
    %58 = vector.broadcast %cst_39 : f32 to vector<16x128xf32>
    %59 = arith.addf %58, %57 : vector<16x128xf32>
    %60 = arith.divf %58, %59 : vector<16x128xf32>
    %61 = arith.mulf %50, %60 : vector<16x128xf32>
    %62 = arith.mulf %61, %21 : vector<16x128xf32>
    %63 = arith.addf %3, %62 : vector<16x128xf32>
    %c0_40 = arith.constant 0 : index
    %c0_41 = arith.constant 0 : index
    %64 = vector.load %arg20[%c0_40, %c0_41] : memref<16x128xf32, #tpu.memory_space<vmem>>, vector<16x128xf32>
    tpu.vector_store %arg20[%c0_40, %c0_41], %63 {strides = array<i32>} : memref<16x128xf32, #tpu.memory_space<vmem>>, vector<16x128xf32>,
    %c32_42 = arith.constant 32 : index
    %c0_43 = arith.constant 0 : index
    %65 = vector.load %arg22[%c32_42, %c0_43] : memref<48x128xf32, #tpu.memory_space<vmem>>, vector<16x128xf32>
    tpu.vector_store %arg22[%c32_42, %c0_43], %63 {strides = array<i32>} : memref<48x128xf32, #tpu.memory_space<vmem>>, vector<16x128xf32>,
    %c0_44 = arith.constant 0 : index
    %c0_45 = arith.constant 0 : index
    %66 = vector.load %arg13[%c0_44, %c0_45] : memref<64x48xf32, #tpu.memory_space<vmem>>, vector<64x48xf32>
    %c0_46 = arith.constant 0 : index
    %c0_47 = arith.constant 0 : index
    %67 = vector.load %arg22[%c0_46, %c0_47] : memref<48x128xf32, #tpu.memory_space<vmem>>, vector<48x128xf32>
    %cst_48 = arith.constant dense<0.000000e+00> : vector<64x128xf32>
    %68 = tpu.matmul %66, %67, %cst_48 {dimension_numbers = #tpu.dot_dimension_numbers<[1], [0], [0], [1], [0, 0, 1, 1], [], []>} : vector<64x48xf32>, vector<48x128xf32>, vector<64x128xf32> -> vector<64x128xf32>
    %c0_49 = arith.constant 0 : index
    %c0_50 = arith.constant 0 : index
    %69 = vector.load %arg14[%c0_49, %c0_50] : memref<64x1xf32, #tpu.memory_space<vmem>>, vector<64x1xf32>
    %70 = vector.broadcast %69 : vector<64x1xf32> to vector<64x128xf32>
    %71 = arith.addf %68, %70 : vector<64x128xf32>
    %72 = arith.negf %71 : vector<64x128xf32>
    %73 = math.exp %72 : vector<64x128xf32>
    %cst_51 = arith.constant 1.000000e+00 : f32
    %74 = vector.broadcast %cst_51 : f32 to vector<64x128xf32>
    %75 = arith.addf %74, %73 : vector<64x128xf32>
    %76 = arith.divf %74, %75 : vector<64x128xf32>
    %77 = arith.mulf %71, %76 : vector<64x128xf32>
    %78 = vector.extract_strided_slice %77 {offsets = [0, 0], sizes = [32, 128], strides = [1, 1]} : vector<64x128xf32> to vector<32x128xf32>
    %79 = vector.extract_strided_slice %77 {offsets = [32, 0], sizes = [32, 128], strides = [1, 1]} : vector<64x128xf32> to vector<32x128xf32>
    %c0_52 = arith.constant 0 : index
    %c0_53 = arith.constant 0 : index
    %80 = vector.load %arg15[%c0_52, %c0_53] : memref<16x32xf32, #tpu.memory_space<vmem>>, vector<16x32xf32>
    %cst_54 = arith.constant dense<0.000000e+00> : vector<16x128xf32>
    %81 = tpu.matmul %80, %78, %cst_54 {dimension_numbers = #tpu.dot_dimension_numbers<[1], [0], [0], [1], [0, 0, 1, 1], [], []>} : vector<16x32xf32>, vector<32x128xf32>, vector<16x128xf32> -> vector<16x128xf32>
    %c0_55 = arith.constant 0 : index
    %c0_56 = arith.constant 0 : index
    %82 = vector.load %arg16[%c0_55, %c0_56] : memref<16x1xf32, #tpu.memory_space<vmem>>, vector<16x1xf32>
    %83 = vector.broadcast %82 : vector<16x1xf32> to vector<16x128xf32>
    %84 = arith.addf %81, %83 : vector<16x128xf32>
    %85 = arith.negf %84 : vector<16x128xf32>
    %86 = math.exp %85 : vector<16x128xf32>
    %cst_57 = arith.constant 1.000000e+00 : f32
    %87 = vector.broadcast %cst_57 : f32 to vector<16x128xf32>
    %88 = arith.addf %87, %86 : vector<16x128xf32>
    %89 = arith.divf %87, %88 : vector<16x128xf32>
    %90 = arith.mulf %84, %89 : vector<16x128xf32>
    %c0_58 = arith.constant 0 : index
    %c0_59 = arith.constant 0 : index
    %91 = vector.load %arg17[%c0_58, %c0_59] : memref<16x32xf32, #tpu.memory_space<vmem>>, vector<16x32xf32>
    %cst_60 = arith.constant dense<0.000000e+00> : vector<16x128xf32>
    %92 = tpu.matmul %91, %79, %cst_60 {dimension_numbers = #tpu.dot_dimension_numbers<[1], [0], [0], [1], [0, 0, 1, 1], [], []>} : vector<16x32xf32>, vector<32x128xf32>, vector<16x128xf32> -> vector<16x128xf32>
    %c0_61 = arith.constant 0 : index
    %c0_62 = arith.constant 0 : index
    %93 = vector.load %arg18[%c0_61, %c0_62] : memref<16x1xf32, #tpu.memory_space<vmem>>, vector<16x1xf32>
    %94 = vector.broadcast %93 : vector<16x1xf32> to vector<16x128xf32>
    %95 = arith.addf %92, %94 : vector<16x128xf32>
    %96 = arith.negf %95 : vector<16x128xf32>
    %97 = math.exp %96 : vector<16x128xf32>
    %cst_63 = arith.constant 1.000000e+00 : f32
    %98 = vector.broadcast %cst_63 : f32 to vector<16x128xf32>
    %99 = arith.addf %98, %97 : vector<16x128xf32>
    %100 = arith.divf %98, %99 : vector<16x128xf32>
    %101 = arith.mulf %90, %100 : vector<16x128xf32>
    %102 = arith.mulf %101, %22 : vector<16x128xf32>
    %cst_64 = arith.constant dense<0.000000e+00> : vector<16x16xf32>
    %103 = tpu.matmul %102, %16, %cst_64 {dimension_numbers = #tpu.dot_dimension_numbers<[1], [1], [0], [0], [0, 0, 1, 0], [], []>} : vector<16x128xf32>, vector<16x128xf32>, vector<16x16xf32> -> vector<16x16xf32>
    %c0_65 = arith.constant 0 : index
    %c0_66 = arith.constant 0 : index
    %c0_67 = arith.constant 0 : index
    %104 = vector.load %arg21[%c0_65, %c0_66, %c0_67] : memref<1x16x16xf32, #tpu.memory_space<vmem>>, vector<1x16x16xf32>
    %105 = vector.shape_cast %104 : vector<1x16x16xf32> to vector<16x16xf32>
    %106 = arith.addf %105, %103 : vector<16x16xf32>
    %c0_68 = arith.constant 0 : index
    %c0_69 = arith.constant 0 : index
    %c0_70 = arith.constant 0 : index
    %107 = vector.load %arg21[%c0_68, %c0_69, %c0_70] : memref<1x16x16xf32, #tpu.memory_space<vmem>>, vector<1x16x16xf32>
    %108 = vector.shape_cast %107 : vector<1x16x16xf32> to vector<16x16xf32>
    %109 = vector.shape_cast %106 : vector<16x16xf32> to vector<1x16x16xf32>
    tpu.vector_store %arg21[%c0_68, %c0_69, %c0_70], %109 {strides = array<i32>} : memref<1x16x16xf32, #tpu.memory_space<vmem>>, vector<1x16x16xf32>,
    return
  }
  func.func @transform_0(%arg0: i32, %arg1: i32) -> (i32, i32) {
    %c1_i32 = arith.constant 1 : i32
    %0 = arith.muli %arg0, %c1_i32 : i32
    %1 = arith.addi %0, %arg1 : i32
    %c0_i32 = arith.constant 0 : i32
    %c0_i32_0 = arith.constant 0 : i32
    return %c0_i32, %1 : i32, i32
  }
  func.func @transform_1(%arg0: i32, %arg1: i32) -> (i32, i32) {
    %c1_i32 = arith.constant 1 : i32
    %0 = arith.muli %arg0, %c1_i32 : i32
    %1 = arith.addi %0, %arg1 : i32
    %c0_i32 = arith.constant 0 : i32
    %c0_i32_0 = arith.constant 0 : i32
    return %c0_i32, %1 : i32, i32
  }
  func.func @transform_2(%arg0: i32, %arg1: i32) -> (i32, i32) {
    %c1_i32 = arith.constant 1 : i32
    %0 = arith.muli %arg0, %c1_i32 : i32
    %1 = arith.addi %0, %arg1 : i32
    %c0_i32 = arith.constant 0 : i32
    %c0_i32_0 = arith.constant 0 : i32
    return %c0_i32, %1 : i32, i32
  }
  func.func @transform_3(%arg0: i32, %arg1: i32) -> (i32, i32) {
    %c1_i32 = arith.constant 1 : i32
    %0 = arith.muli %arg0, %c1_i32 : i32
    %1 = arith.addi %0, %arg1 : i32
    %c0_i32 = arith.constant 0 : i32
    %c0_i32_0 = arith.constant 0 : i32
    return %c0_i32, %1 : i32, i32
  }
  func.func @transform_4(%arg0: i32, %arg1: i32) -> (i32, i32) {
    %c0_i32 = arith.constant 0 : i32
    %c0_i32_0 = arith.constant 0 : i32
    %c0_i32_1 = arith.constant 0 : i32
    return %c0_i32, %c0_i32_0 : i32, i32
  }
  func.func @transform_5(%arg0: i32, %arg1: i32) -> (i32, i32) {
    %c0_i32 = arith.constant 0 : i32
    %c0_i32_0 = arith.constant 0 : i32
    %c0_i32_1 = arith.constant 0 : i32
    return %c0_i32, %c0_i32_0 : i32, i32
  }
  func.func @transform_6(%arg0: i32, %arg1: i32) -> (i32, i32) {
    %c0_i32 = arith.constant 0 : i32
    %c0_i32_0 = arith.constant 0 : i32
    %c0_i32_1 = arith.constant 0 : i32
    return %c0_i32, %c0_i32_0 : i32, i32
  }
  func.func @transform_7(%arg0: i32, %arg1: i32) -> (i32, i32) {
    %c0_i32 = arith.constant 0 : i32
    %c0_i32_0 = arith.constant 0 : i32
    %c0_i32_1 = arith.constant 0 : i32
    return %c0_i32, %c0_i32_0 : i32, i32
  }
  func.func @transform_8(%arg0: i32, %arg1: i32) -> (i32, i32) {
    %c0_i32 = arith.constant 0 : i32
    %c0_i32_0 = arith.constant 0 : i32
    %c0_i32_1 = arith.constant 0 : i32
    return %c0_i32, %c0_i32_0 : i32, i32
  }
  func.func @transform_9(%arg0: i32, %arg1: i32) -> (i32, i32) {
    %c0_i32 = arith.constant 0 : i32
    %c0_i32_0 = arith.constant 0 : i32
    %c0_i32_1 = arith.constant 0 : i32
    return %c0_i32, %c0_i32_0 : i32, i32
  }
  func.func @transform_10(%arg0: i32, %arg1: i32) -> (i32, i32) {
    %c0_i32 = arith.constant 0 : i32
    %c0_i32_0 = arith.constant 0 : i32
    %c0_i32_1 = arith.constant 0 : i32
    return %c0_i32, %c0_i32_0 : i32, i32
  }
  func.func @transform_11(%arg0: i32, %arg1: i32) -> (i32, i32) {
    %c0_i32 = arith.constant 0 : i32
    %c0_i32_0 = arith.constant 0 : i32
    %c0_i32_1 = arith.constant 0 : i32
    return %c0_i32, %c0_i32_0 : i32, i32
  }
  func.func @transform_12(%arg0: i32, %arg1: i32) -> (i32, i32) {
    %c0_i32 = arith.constant 0 : i32
    %c0_i32_0 = arith.constant 0 : i32
    %c0_i32_1 = arith.constant 0 : i32
    return %c0_i32, %c0_i32_0 : i32, i32
  }
  func.func @transform_13(%arg0: i32, %arg1: i32) -> (i32, i32) {
    %c0_i32 = arith.constant 0 : i32
    %c0_i32_0 = arith.constant 0 : i32
    %c0_i32_1 = arith.constant 0 : i32
    return %c0_i32, %c0_i32_0 : i32, i32
  }
  func.func @transform_14(%arg0: i32, %arg1: i32) -> (i32, i32) {
    %c0_i32 = arith.constant 0 : i32
    %c0_i32_0 = arith.constant 0 : i32
    %c0_i32_1 = arith.constant 0 : i32
    return %c0_i32, %c0_i32_0 : i32, i32
  }
  func.func @transform_15(%arg0: i32, %arg1: i32) -> (i32, i32) {
    %c0_i32 = arith.constant 0 : i32
    %c0_i32_0 = arith.constant 0 : i32
    %c0_i32_1 = arith.constant 0 : i32
    return %c0_i32, %c0_i32_0 : i32, i32
  }
  func.func @transform_16(%arg0: i32, %arg1: i32) -> (i32, i32) {
    %c0_i32 = arith.constant 0 : i32
    %c0_i32_0 = arith.constant 0 : i32
    %c0_i32_1 = arith.constant 0 : i32
    return %c0_i32, %c0_i32_0 : i32, i32
  }
  func.func @transform_17(%arg0: i32, %arg1: i32) -> (i32, i32) {
    %c0_i32 = arith.constant 0 : i32
    %c0_i32_0 = arith.constant 0 : i32
    %c0_i32_1 = arith.constant 0 : i32
    return %c0_i32, %c0_i32_0 : i32, i32
  }
  func.func @transform_18(%arg0: i32, %arg1: i32) -> (i32, i32) {
    %c1_i32 = arith.constant 1 : i32
    %0 = arith.muli %arg0, %c1_i32 : i32
    %1 = arith.addi %0, %arg1 : i32
    %c0_i32 = arith.constant 0 : i32
    %c0_i32_0 = arith.constant 0 : i32
    return %c0_i32, %1 : i32, i32
  }
  func.func @transform_19(%arg0: i32, %arg1: i32) -> (i32, i32, i32) {
    %c0_i32 = arith.constant 0 : i32
    %c0_i32_0 = arith.constant 0 : i32
    %c0_i32_1 = arith.constant 0 : i32
    return %arg0, %c0_i32, %c0_i32_0 : i32, i32, i32
  }
}

</mosaic_0001>

<llo_original>
// kernel: tpu_custom_call.1
$region0: #{tpu_custom_call.1}
  #allocation0 [shape = 'u32[]', space=smem, size = 0x4, offset = 0x4, fixed_abs, tag = 'smem constant byte address 0x4 - core index']
  #allocation1 [shape = 'u32[144,128]{1,0:T(1,128)}', space=vmem, size = 0x12000, scoped, tag = 'internal scratch']
  #allocation2 [shape = 'f32[48,128]{1,0:T(8,128)}', space=vmem, size = 0x6000, scoped, tag = 'scratch operand']
  #allocation3 [shape = 's32[16,128]{1,0:T(8,128)}', space=vmem, size = 0x2000, scoped, tag = 'scratch operand']
  %s0 = inlined_call_operand.vmem [shape: f32[16,256], index: 0, kind: input, shape index: {}]
  %s1 = inlined_call_operand.vmem [shape: f32[8,256], index: 1, kind: input, shape index: {}]
  %s2 = inlined_call_operand.vmem [shape: s32[1,256], index: 2, kind: input, shape index: {}]
  %s3 = inlined_call_operand.vmem [shape: s32[1,256], index: 3, kind: input, shape index: {}]
  %s4 = inlined_call_operand.vmem [shape: f32[16,16], index: 4, kind: input, shape index: {}]
  %s5 = inlined_call_operand.vmem [shape: f32[64,48], index: 5, kind: input, shape index: {}]
  %s6 = inlined_call_operand.vmem [shape: f32[64,1], index: 6, kind: input, shape index: {}]
  %s7 = inlined_call_operand.vmem [shape: f32[16,32], index: 7, kind: input, shape index: {}]
  %s8 = inlined_call_operand.vmem [shape: f32[16,1], index: 8, kind: input, shape index: {}]
  %s9 = inlined_call_operand.vmem [shape: f32[16,32], index: 9, kind: input, shape index: {}]
  %s10 = inlined_call_operand.vmem [shape: f32[16,1], index: 10, kind: input, shape index: {}]
  %s11 = inlined_call_operand.vmem [shape: f32[64,48], index: 11, kind: input, shape index: {}]
  %s12 = inlined_call_operand.vmem [shape: f32[64,1], index: 12, kind: input, shape index: {}]
  %s13 = inlined_call_operand.vmem [shape: f32[16,32], index: 13, kind: input, shape index: {}]
  %s14 = inlined_call_operand.vmem [shape: f32[16,1], index: 14, kind: input, shape index: {}]
  %s15 = inlined_call_operand.vmem [shape: f32[16,32], index: 15, kind: input, shape index: {}]
  %s16 = inlined_call_operand.vmem [shape: f32[16,1], index: 16, kind: input, shape index: {}]
  %s17 = inlined_call_operand.vmem [shape: f32[32,8], index: 17, kind: input, shape index: {}]
  %s18 = inlined_call_operand.hbm [shape: f32[16,256], index: 18, kind: output, shape index: {0}]
  %s19 = inlined_call_operand.hbm [shape: f32[2,16,16], index: 19, kind: output, shape index: {1}]
  %20 = xla_tuple %s18, %s19
  %s21 = sld [smem:[#allocation0]]
  $region155: #{tpu_custom_call.1} parent=0
    _
  %s23 = ssub.s32 1, %s21
  %s24 = scalar_select 0, %s23, %s21
  $region1: #{tpu_custom_call.1} parent=0
    #allocation4 [shape = 'u8[16384]{0}', space=vmem, size = 0x4000, scoped, tag = 'input window, operand 0']
    #allocation5 [shape = 'u8[16384]{0}', space=vmem, size = 0x4000, scoped, tag = 'output window, operand 0']
    #allocation6 [shape = 's32[2]{0}', space=sflag, size = 0x8, scoped, tag = 'scoped memory for tpu_custom_call.1']
    #allocation7 [shape = 'u8[16384]{0}', space=vmem, size = 0x4000, scoped, tag = 'output window, operand 1']
    #allocation8 [shape = 's32[2]{0}', space=sflag, size = 0x8, scoped, tag = 'scoped memory for tpu_custom_call.1']
    %25 = vsyncpa [#allocation6], 0
    %s26 = scalar_lea.sflag [#allocation6], 1
    %27 = vsyncpa %s26, 0
    %28 = vsyncpa [#allocation8], 0
    %s29 = scalar_lea.sflag [#allocation8], 1
    %30 = vsyncpa %s29, 0
    loop: start=0, step=1, limit=4
    $region2: #{tpu_custom_call.1} parent=1 // loop_pre_header
      _
    $region3: #{tpu_custom_call.1} parent=1 // loop_header
      %s32 = sphi 0, %s36
      %p33 = scmp.ge.s32.totalorder %s32, 4
      %s39 = sphi 0, %s51
      %s40 = sphi 0, %s47
      %s41 = sphi 0, %s39
      %s42 = sphi 0, %s40
      %s43 = sphi 0, %s41
      %s44 = sphi 0, %s42
      %s56 = sphi 0, %s58
      %s59 = sphi 0, %s56
      %s60 = sphi 0, %s59
      %s76 = sphi 0, %s60
      %s84 = sphi 0, %s86
      %s87 = sphi 0, %s84
      %s88 = sphi 0, %s87
      %s104 = sphi 0, %s88
      %s112 = sphi 0, %s114
      %s115 = sphi 0, %s112
      %s116 = sphi 0, %s115
      %s132 = sphi 0, %s116
      %s140 = sphi 0, %s142
      %s143 = sphi 0, %s140
      %s144 = sphi 0, %s143
      %s160 = sphi 0, %s144
      %s164 = sphi 0, %s164
      %s166 = sphi 0, %s164
      %s167 = sphi 0, %s166
      %s181 = sphi 0, %s167
      %s185 = sphi 0, %s185
      %s187 = sphi 0, %s185
      %s188 = sphi 0, %s187
      %s202 = sphi 0, %s188
      %s206 = sphi 0, %s206
      %s208 = sphi 0, %s206
      %s209 = sphi 0, %s208
      %s223 = sphi 0, %s209
      %s227 = sphi 0, %s227
      %s229 = sphi 0, %s227
      %s230 = sphi 0, %s229
      %s244 = sphi 0, %s230
      %s248 = sphi 0, %s248
      %s250 = sphi 0, %s248
      %s251 = sphi 0, %s250
      %s265 = sphi 0, %s251
      %s269 = sphi 0, %s269
      %s271 = sphi 0, %s269
      %s272 = sphi 0, %s271
      %s286 = sphi 0, %s272
      %s290 = sphi 0, %s290
      %s292 = sphi 0, %s290
      %s293 = sphi 0, %s292
      %s307 = sphi 0, %s293
      %s311 = sphi 0, %s311
      %s313 = sphi 0, %s311
      %s314 = sphi 0, %s313
      %s328 = sphi 0, %s314
      %s332 = sphi 0, %s332
      %s334 = sphi 0, %s332
      %s335 = sphi 0, %s334
      %s349 = sphi 0, %s335
      %s353 = sphi 0, %s353
      %s355 = sphi 0, %s353
      %s356 = sphi 0, %s355
      %s370 = sphi 0, %s356
      %s374 = sphi 0, %s374
      %s376 = sphi 0, %s374
      %s377 = sphi 0, %s376
      %s391 = sphi 0, %s377
      %s395 = sphi 0, %s395
      %s397 = sphi 0, %s395
      %s398 = sphi 0, %s397
      %s412 = sphi 0, %s398
      %s416 = sphi 0, %s416
      %s418 = sphi 0, %s416
      %s419 = sphi 0, %s418
      %s433 = sphi 0, %s419
      %s437 = sphi 0, %s437
      %s439 = sphi 0, %s437
      %s440 = sphi 0, %s439
      %s454 = sphi 0, %s440
      %s462 = sphi 0, %s464
      %s465 = sphi 0, %s462
      %s466 = sphi 0, %s465
      %s482 = sphi 0, %s466
      %s488 = sphi 0, %s490
      %s491 = sphi 0, %s488
      %s492 = sphi 0, %s491
      %s508 = sphi 0, %s492
    $region4: #{tpu_custom_call.1} parent=1 // loop_header_branch
      %35 = sbr.rel (%p33) target = $region8
    $region5: #{tpu_custom_call.1} parent=1 // loop_body
      %s37 = ssub.s32 %s32, 1
      %s38 = ssub.s32 %s32, 2
      %s45 = sadd.s32 1, %s40
      %p46 = scmp.ge.s32.totalorder %s45, 1
      %s47 = scalar_select %p46, 0, %s45
      %s48 = sadd.s32 1, %s39
      %s49 = scalar_select %p46, %s48, %s39
      %p50 = scmp.ge.s32.totalorder %s49, 2
      %s51 = scalar_select %p50, 0, %s49
      %s52 = sadd.s32 %s39, %s40
      %s53 = sadd.s32 %s51, %s47
      %s54 = ssub.s32 %s52, %s53
      %p55 = scmp.eq.s32.totalorder %s54, 0
      %s57 = sadd.s32 %s56, 1
      %s58 = scalar_select %p55, %s56, %s57
      %p61 = pneg %p55
      %p62 = scmp.eq.s32.totalorder %s32, 1
      %p63 = por %p61, %p62
      %p64 = scmp.ne.s32.totalorder %s56, %s59
      %p65 = scmp.eq.s32.totalorder %s32, 0
      %p66 = por %p64, %p65
      %p67 = scmp.ne.s32.totalorder %s56, %s59
      %p68 = scmp.eq.s32.totalorder %s37, 1
      %p69 = por %p67, %p68
      %p70 = scmp.ne.s32.totalorder %s59, %s60
      %p71 = scmp.eq.s32.totalorder %s37, 0
      %p72 = por %p70, %p71
      %p73 = scmp.ne.s32.totalorder %s59, %s60
      %p74 = scmp.eq.s32.totalorder %s38, 1
      %p75 = por %p73, %p74
      %p77 = scmp.ne.s32.totalorder %s60, %s76
      %p78 = scmp.eq.s32.totalorder %s38, 0
      %p79 = por %p77, %p78
      %s80 = sadd.s32 %s39, %s40
      %s81 = sadd.s32 %s51, %s47
      %s82 = ssub.s32 %s80, %s81
      %p83 = scmp.eq.s32.totalorder %s82, 0
      %s85 = sadd.s32 %s84, 1
      %s86 = scalar_select %p83, %s84, %s85
      %p89 = pneg %p83
      %p90 = scmp.eq.s32.totalorder %s32, 1
      %p91 = por %p89, %p90
      %p92 = scmp.ne.s32.totalorder %s84, %s87
      %p93 = scmp.eq.s32.totalorder %s32, 0
      %p94 = por %p92, %p93
      %p95 = scmp.ne.s32.totalorder %s84, %s87
      %p96 = scmp.eq.s32.totalorder %s37, 1
      %p97 = por %p95, %p96
      %p98 = scmp.ne.s32.totalorder %s87, %s88
      %p99 = scmp.eq.s32.totalorder %s37, 0
      %p100 = por %p98, %p99
      %p101 = scmp.ne.s32.totalorder %s87, %s88
      %p102 = scmp.eq.s32.totalorder %s38, 1
      %p103 = por %p101, %p102
      %p105 = scmp.ne.s32.totalorder %s88, %s104
      %p106 = scmp.eq.s32.totalorder %s38, 0
      %p107 = por %p105, %p106
      %s108 = sadd.s32 %s39, %s40
      %s109 = sadd.s32 %s51, %s47
      %s110 = ssub.s32 %s108, %s109
      %p111 = scmp.eq.s32.totalorder %s110, 0
      %s113 = sadd.s32 %s112, 1
      %s114 = scalar_select %p111, %s112, %s113
      %p117 = pneg %p111
      %p118 = scmp.eq.s32.totalorder %s32, 1
      %p119 = por %p117, %p118
      %p120 = scmp.ne.s32.totalorder %s112, %s115
      %p121 = scmp.eq.s32.totalorder %s32, 0
      %p122 = por %p120, %p121
      %p123 = scmp.ne.s32.totalorder %s112, %s115
      %p124 = scmp.eq.s32.totalorder %s37, 1
      %p125 = por %p123, %p124
      %p126 = scmp.ne.s32.totalorder %s115, %s116
      %p127 = scmp.eq.s32.totalorder %s37, 0
      %p128 = por %p126, %p127
      %p129 = scmp.ne.s32.totalorder %s115, %s116
      %p130 = scmp.eq.s32.totalorder %s38, 1
      %p131 = por %p129, %p130
      %p133 = scmp.ne.s32.totalorder %s116, %s132
      %p134 = scmp.eq.s32.totalorder %s38, 0
      %p135 = por %p133, %p134
      %s136 = sadd.s32 %s39, %s40
      %s137 = sadd.s32 %s51, %s47
      %s138 = ssub.s32 %s136, %s137
      %p139 = scmp.eq.s32.totalorder %s138, 0
      %s141 = sadd.s32 %s140, 1
      %s142 = scalar_select %p139, %s140, %s141
      %p145 = pneg %p139
      %p146 = scmp.eq.s32.totalorder %s32, 1
      %p147 = por %p145, %p146
      %p148 = scmp.ne.s32.totalorder %s140, %s143
      %p149 = scmp.eq.s32.totalorder %s32, 0
      %p150 = por %p148, %p149
      %p151 = scmp.ne.s32.totalorder %s140, %s143
      %p152 = scmp.eq.s32.totalorder %s37, 1
      %p153 = por %p151, %p152
      %p154 = scmp.ne.s32.totalorder %s143, %s144
      %p155 = scmp.eq.s32.totalorder %s37, 0
      %p156 = por %p154, %p155
      %p157 = scmp.ne.s32.totalorder %s143, %s144
      %p158 = scmp.eq.s32.totalorder %s38, 1
      %p159 = por %p157, %p158
      %p161 = scmp.ne.s32.totalorder %s144, %s160
      %p162 = scmp.eq.s32.totalorder %s38, 0
      %p163 = por %p161, %p162
      %s165 = sadd.s32 %s164, 1
      %p168 = scmp.eq.s32.totalorder %s32, 1
      %p169 = scmp.ne.s32.totalorder %s164, %s166
      %p170 = scmp.eq.s32.totalorder %s32, 0
      %p171 = por %p169, %p170
      %p172 = scmp.ne.s32.totalorder %s164, %s166
      %p173 = scmp.eq.s32.totalorder %s37, 1
      %p174 = por %p172, %p173
      %p175 = scmp.ne.s32.totalorder %s166, %s167
      %p176 = scmp.eq.s32.totalorder %s37, 0
      %p177 = por %p175, %p176
      %p178 = scmp.ne.s32.totalorder %s166, %s167
      %p179 = scmp.eq.s32.totalorder %s38, 1
      %p180 = por %p178, %p179
      %p182 = scmp.ne.s32.totalorder %s167, %s181
      %p183 = scmp.eq.s32.totalorder %s38, 0
      %p184 = por %p182, %p183
      %s186 = sadd.s32 %s185, 1
      %p189 = scmp.eq.s32.totalorder %s32, 1
      %p190 = scmp.ne.s32.totalorder %s185, %s187
      %p191 = scmp.eq.s32.totalorder %s32, 0
      %p192 = por %p190, %p191
      %p193 = scmp.ne.s32.totalorder %s185, %s187
      %p194 = scmp.eq.s32.totalorder %s37, 1
      %p195 = por %p193, %p194
      %p196 = scmp.ne.s32.totalorder %s187, %s188
      %p197 = scmp.eq.s32.totalorder %s37, 0
      %p198 = por %p196, %p197
      %p199 = scmp.ne.s32.totalorder %s187, %s188
      %p200 = scmp.eq.s32.totalorder %s38, 1
      %p201 = por %p199, %p200
      %p203 = scmp.ne.s32.totalorder %s188, %s202
      %p204 = scmp.eq.s32.totalorder %s38, 0
      %p205 = por %p203, %p204
      %s207 = sadd.s32 %s206, 1
      %p210 = scmp.eq.s32.totalorder %s32, 1
      %p211 = scmp.ne.s32.totalorder %s206, %s208
      %p212 = scmp.eq.s32.totalorder %s32, 0
      %p213 = por %p211, %p212
      %p214 = scmp.ne.s32.totalorder %s206, %s208
      %p215 = scmp.eq.s32.totalorder %s37, 1
      %p216 = por %p214, %p215
      %p217 = scmp.ne.s32.totalorder %s208, %s209
      %p218 = scmp.eq.s32.totalorder %s37, 0
      %p219 = por %p217, %p218
      %p220 = scmp.ne.s32.totalorder %s208, %s209
      %p221 = scmp.eq.s32.totalorder %s38, 1
      %p222 = por %p220, %p221
      %p224 = scmp.ne.s32.totalorder %s209, %s223
      %p225 = scmp.eq.s32.totalorder %s38, 0
      %p226 = por %p224, %p225
      %s228 = sadd.s32 %s227, 1
      %p231 = scmp.eq.s32.totalorder %s32, 1
      %p232 = scmp.ne.s32.totalorder %s227, %s229
      %p233 = scmp.eq.s32.totalorder %s32, 0
      %p234 = por %p232, %p233
      %p235 = scmp.ne.s32.totalorder %s227, %s229
      %p236 = scmp.eq.s32.totalorder %s37, 1
      %p237 = por %p235, %p236
      %p238 = scmp.ne.s32.totalorder %s229, %s230
      %p239 = scmp.eq.s32.totalorder %s37, 0
      %p240 = por %p238, %p239
      %p241 = scmp.ne.s32.totalorder %s229, %s230
      %p242 = scmp.eq.s32.totalorder %s38, 1
      %p243 = por %p241, %p242
      %p245 = scmp.ne.s32.totalorder %s230, %s244
      %p246 = scmp.eq.s32.totalorder %s38, 0
      %p247 = por %p245, %p246
      %s249 = sadd.s32 %s248, 1
      %p252 = scmp.eq.s32.totalorder %s32, 1
      %p253 = scmp.ne.s32.totalorder %s248, %s250
      %p254 = scmp.eq.s32.totalorder %s32, 0
      %p255 = por %p253, %p254
      %p256 = scmp.ne.s32.totalorder %s248, %s250
      %p257 = scmp.eq.s32.totalorder %s37, 1
      %p258 = por %p256, %p257
      %p259 = scmp.ne.s32.totalorder %s250, %s251
      %p260 = scmp.eq.s32.totalorder %s37, 0
      %p261 = por %p259, %p260
      %p262 = scmp.ne.s32.totalorder %s250, %s251
      %p263 = scmp.eq.s32.totalorder %s38, 1
      %p264 = por %p262, %p263
      %p266 = scmp.ne.s32.totalorder %s251, %s265
      %p267 = scmp.eq.s32.totalorder %s38, 0
      %p268 = por %p266, %p267
      %s270 = sadd.s32 %s269, 1
      %p273 = scmp.eq.s32.totalorder %s32, 1
      %p274 = scmp.ne.s32.totalorder %s269, %s271
      %p275 = scmp.eq.s32.totalorder %s32, 0
      %p276 = por %p274, %p275
      %p277 = scmp.ne.s32.totalorder %s269, %s271
      %p278 = scmp.eq.s32.totalorder %s37, 1
      %p279 = por %p277, %p278
      %p280 = scmp.ne.s32.totalorder %s271, %s272
      %p281 = scmp.eq.s32.totalorder %s37, 0
      %p282 = por %p280, %p281
      %p283 = scmp.ne.s32.totalorder %s271, %s272
      %p284 = scmp.eq.s32.totalorder %s38, 1
      %p285 = por %p283, %p284
      %p287 = scmp.ne.s32.totalorder %s272, %s286
      %p288 = scmp.eq.s32.totalorder %s38, 0
      %p289 = por %p287, %p288
      %s291 = sadd.s32 %s290, 1
      %p294 = scmp.eq.s32.totalorder %s32, 1
      %p295 = scmp.ne.s32.totalorder %s290, %s292
      %p296 = scmp.eq.s32.totalorder %s32, 0
      %p297 = por %p295, %p296
      %p298 = scmp.ne.s32.totalorder %s290, %s292
      %p299 = scmp.eq.s32.totalorder %s37, 1
      %p300 = por %p298, %p299
      %p301 = scmp.ne.s32.totalorder %s292, %s293
      %p302 = scmp.eq.s32.totalorder %s37, 0
      %p303 = por %p301, %p302
      %p304 = scmp.ne.s32.totalorder %s292, %s293
      %p305 = scmp.eq.s32.totalorder %s38, 1
      %p306 = por %p304, %p305
      %p308 = scmp.ne.s32.totalorder %s293, %s307
      %p309 = scmp.eq.s32.totalorder %s38, 0
      %p310 = por %p308, %p309
      %s312 = sadd.s32 %s311, 1
      %p315 = scmp.eq.s32.totalorder %s32, 1
      %p316 = scmp.ne.s32.totalorder %s311, %s313
      %p317 = scmp.eq.s32.totalorder %s32, 0
      %p318 = por %p316, %p317
      %p319 = scmp.ne.s32.totalorder %s311, %s313
      %p320 = scmp.eq.s32.totalorder %s37, 1
      %p321 = por %p319, %p320
      %p322 = scmp.ne.s32.totalorder %s313, %s314
      %p323 = scmp.eq.s32.totalorder %s37, 0
      %p324 = por %p322, %p323
      %p325 = scmp.ne.s32.totalorder %s313, %s314
      %p326 = scmp.eq.s32.totalorder %s38, 1
      %p327 = por %p325, %p326
      %p329 = scmp.ne.s32.totalorder %s314, %s328
      %p330 = scmp.eq.s32.totalorder %s38, 0
      %p331 = por %p329, %p330
      %s333 = sadd.s32 %s332, 1
      %p336 = scmp.eq.s32.totalorder %s32, 1
      %p337 = scmp.ne.s32.totalorder %s332, %s334
      %p338 = scmp.eq.s32.totalorder %s32, 0
      %p339 = por %p337, %p338
      %p340 = scmp.ne.s32.totalorder %s332, %s334
      %p341 = scmp.eq.s32.totalorder %s37, 1
      %p342 = por %p340, %p341
      %p343 = scmp.ne.s32.totalorder %s334, %s335
      %p344 = scmp.eq.s32.totalorder %s37, 0
      %p345 = por %p343, %p344
      %p346 = scmp.ne.s32.totalorder %s334, %s335
      %p347 = scmp.eq.s32.totalorder %s38, 1
      %p348 = por %p346, %p347
      %p350 = scmp.ne.s32.totalorder %s335, %s349
      %p351 = scmp.eq.s32.totalorder %s38, 0
      %p352 = por %p350, %p351
      %s354 = sadd.s32 %s353, 1
      %p357 = scmp.eq.s32.totalorder %s32, 1
      %p358 = scmp.ne.s32.totalorder %s353, %s355
      %p359 = scmp.eq.s32.totalorder %s32, 0
      %p360 = por %p358, %p359
      %p361 = scmp.ne.s32.totalorder %s353, %s355
      %p362 = scmp.eq.s32.totalorder %s37, 1
      %p363 = por %p361, %p362
      %p364 = scmp.ne.s32.totalorder %s355, %s356
      %p365 = scmp.eq.s32.totalorder %s37, 0
      %p366 = por %p364, %p365
      %p367 = scmp.ne.s32.totalorder %s355, %s356
      %p368 = scmp.eq.s32.totalorder %s38, 1
      %p369 = por %p367, %p368
      %p371 = scmp.ne.s32.totalorder %s356, %s370
      %p372 = scmp.eq.s32.totalorder %s38, 0
      %p373 = por %p371, %p372
      %s375 = sadd.s32 %s374, 1
      %p378 = scmp.eq.s32.totalorder %s32, 1
      %p379 = scmp.ne.s32.totalorder %s374, %s376
      %p380 = scmp.eq.s32.totalorder %s32, 0
      %p381 = por %p379, %p380
      %p382 = scmp.ne.s32.totalorder %s374, %s376
      %p383 = scmp.eq.s32.totalorder %s37, 1
      %p384 = por %p382, %p383
      %p385 = scmp.ne.s32.totalorder %s376, %s377
      %p386 = scmp.eq.s32.totalorder %s37, 0
      %p387 = por %p385, %p386
      %p388 = scmp.ne.s32.totalorder %s376, %s377
      %p389 = scmp.eq.s32.totalorder %s38, 1
      %p390 = por %p388, %p389
      %p392 = scmp.ne.s32.totalorder %s377, %s391
      %p393 = scmp.eq.s32.totalorder %s38, 0
      %p394 = por %p392, %p393
      %s396 = sadd.s32 %s395, 1
      %p399 = scmp.eq.s32.totalorder %s32, 1
      %p400 = scmp.ne.s32.totalorder %s395, %s397
      %p401 = scmp.eq.s32.totalorder %s32, 0
      %p402 = por %p400, %p401
      %p403 = scmp.ne.s32.totalorder %s395, %s397
      %p404 = scmp.eq.s32.totalorder %s37, 1
      %p405 = por %p403, %p404
      %p406 = scmp.ne.s32.totalorder %s397, %s398
      %p407 = scmp.eq.s32.totalorder %s37, 0
      %p408 = por %p406, %p407
      %p409 = scmp.ne.s32.totalorder %s397, %s398
      %p410 = scmp.eq.s32.totalorder %s38, 1
      %p411 = por %p409, %p410
      %p413 = scmp.ne.s32.totalorder %s398, %s412
      %p414 = scmp.eq.s32.totalorder %s38, 0
      %p415 = por %p413, %p414
      %s417 = sadd.s32 %s416, 1
      %p420 = scmp.eq.s32.totalorder %s32, 1
      %p421 = scmp.ne.s32.totalorder %s416, %s418
      %p422 = scmp.eq.s32.totalorder %s32, 0
      %p423 = por %p421, %p422
      %p424 = scmp.ne.s32.totalorder %s416, %s418
      %p425 = scmp.eq.s32.totalorder %s37, 1
      %p426 = por %p424, %p425
      %p427 = scmp.ne.s32.totalorder %s418, %s419
      %p428 = scmp.eq.s32.totalorder %s37, 0
      %p429 = por %p427, %p428
      %p430 = scmp.ne.s32.totalorder %s418, %s419
      %p431 = scmp.eq.s32.totalorder %s38, 1
      %p432 = por %p430, %p431
      %p434 = scmp.ne.s32.totalorder %s419, %s433
      %p435 = scmp.eq.s32.totalorder %s38, 0
      %p436 = por %p434, %p435
      %s438 = sadd.s32 %s437, 1
      %p441 = scmp.eq.s32.totalorder %s32, 1
      %p442 = scmp.ne.s32.totalorder %s437, %s439
      %p443 = scmp.eq.s32.totalorder %s32, 0
      %p444 = por %p442, %p443
      %p445 = scmp.ne.s32.totalorder %s437, %s439
      %p446 = scmp.eq.s32.totalorder %s37, 1
      %p447 = por %p445, %p446
      %p448 = scmp.ne.s32.totalorder %s439, %s440
      %p449 = scmp.eq.s32.totalorder %s37, 0
      %p450 = por %p448, %p449
      %p451 = scmp.ne.s32.totalorder %s439, %s440
      %p452 = scmp.eq.s32.totalorder %s38, 1
      %p453 = por %p451, %p452
      %p455 = scmp.ne.s32.totalorder %s440, %s454
      %p456 = scmp.eq.s32.totalorder %s38, 0
      %p457 = por %p455, %p456
      %s458 = sadd.s32 %s39, %s40
      %s459 = sadd.s32 %s51, %s47
      %s460 = ssub.s32 %s458, %s459
      %p461 = scmp.eq.s32.totalorder %s460, 0
      %s463 = sadd.s32 %s462, 1
      %s464 = scalar_select %p461, %s462, %s463
      %p467 = pneg %p461
      %p468 = scmp.eq.s32.totalorder %s32, 1
      %p469 = por %p467, %p468
      %p470 = scmp.ne.s32.totalorder %s462, %s465
      %p471 = scmp.eq.s32.totalorder %s32, 0
      %p472 = por %p470, %p471
      %p473 = scmp.ne.s32.totalorder %s462, %s465
      %p474 = scmp.eq.s32.totalorder %s37, 1
      %p475 = por %p473, %p474
      %p476 = scmp.ne.s32.totalorder %s465, %s466
      %p477 = scmp.eq.s32.totalorder %s37, 0
      %p478 = por %p476, %p477
      %p479 = scmp.ne.s32.totalorder %s465, %s466
      %p480 = scmp.eq.s32.totalorder %s38, 1
      %p481 = por %p479, %p480
      %p483 = scmp.ne.s32.totalorder %s466, %s482
      %p484 = scmp.eq.s32.totalorder %s38, 0
      %p485 = por %p483, %p484
      %s486 = ssub.s32 %s39, %s51
      %p487 = scmp.eq.s32.totalorder %s486, 0
      %s489 = sadd.s32 %s488, 1
      %s490 = scalar_select %p487, %s488, %s489
      %p493 = pneg %p487
      %p494 = scmp.eq.s32.totalorder %s32, 1
      %p495 = por %p493, %p494
      %p496 = scmp.ne.s32.totalorder %s488, %s491
      %p497 = scmp.eq.s32.totalorder %s32, 0
      %p498 = por %p496, %p497
      %p499 = scmp.ne.s32.totalorder %s488, %s491
      %p500 = scmp.eq.s32.totalorder %s37, 1
      %p501 = por %p499, %p500
      %p502 = scmp.ne.s32.totalorder %s491, %s492
      %p503 = scmp.eq.s32.totalorder %s37, 0
      %p504 = por %p502, %p503
      %p505 = scmp.ne.s32.totalorder %s491, %s492
      %p506 = scmp.eq.s32.totalorder %s38, 1
      %p507 = por %p505, %p506
      %p509 = scmp.ne.s32.totalorder %s492, %s508
      %p510 = scmp.eq.s32.totalorder %s38, 0
      %p511 = por %p509, %p510
      %p512 = scmp.le.s32.totalorder 1, %s32
      %p513 = scmp.lt.s32.totalorder %s32, 3
      %p514 = pnand %p512, %p513
      %p515 = pneg %p514
      // Predicated region
      $region9: #{tpu_custom_call.1} parent=5 // pred_check
        _
      $region10: #{tpu_custom_call.1} parent=5 // pred_check_branch
        %517 = sbr.rel (%p514) target = $region12
      $region11: #{tpu_custom_call.1} parent=5 // pred_region
        %s518 = ssub.s32 %s32, 1
        // Predicated region
        $region13: #{tpu_custom_call.1} parent=11 // pred_check
          %p519 = pneg %p177
        $region14: #{tpu_custom_call.1} parent=11 // pred_check_branch
          %521 = sbr.rel (%p519) target = $region16
        $region15: #{tpu_custom_call.1} parent=11 // pred_region
          _
        $region16: #{tpu_custom_call.1} parent=11 // pred_fallthru
          _
        // Predicated region
        $region17: #{tpu_custom_call.1} parent=11 // pred_check
          %p522 = pneg %p198
        $region18: #{tpu_custom_call.1} parent=11 // pred_check_branch
          %524 = sbr.rel (%p522) target = $region20
        $region19: #{tpu_custom_call.1} parent=11 // pred_region
          _
        $region20: #{tpu_custom_call.1} parent=11 // pred_fallthru
          _
        // Predicated region
        $region21: #{tpu_custom_call.1} parent=11 // pred_check
          %p525 = pneg %p219
        $region22: #{tpu_custom_call.1} parent=11 // pred_check_branch
          %527 = sbr.rel (%p525) target = $region24
        $region23: #{tpu_custom_call.1} parent=11 // pred_region
          _
        $region24: #{tpu_custom_call.1} parent=11 // pred_fallthru
          _
        // Predicated region
        $region25: #{tpu_custom_call.1} parent=11 // pred_check
          %p528 = pneg %p240
        $region26: #{tpu_custom_call.1} parent=11 // pred_check_branch
          %530 = sbr.rel (%p528) target = $region28
        $region27: #{tpu_custom_call.1} parent=11 // pred_region
          _
        $region28: #{tpu_custom_call.1} parent=11 // pred_fallthru
          _
        // Predicated region
        $region29: #{tpu_custom_call.1} parent=11 // pred_check
          %p531 = pneg %p261
        $region30: #{tpu_custom_call.1} parent=11 // pred_check_branch
          %533 = sbr.rel (%p531) target = $region32
        $region31: #{tpu_custom_call.1} parent=11 // pred_region
          _
        $region32: #{tpu_custom_call.1} parent=11 // pred_fallthru
          _
        // Predicated region
        $region33: #{tpu_custom_call.1} parent=11 // pred_check
          %p534 = pneg %p282
        $region34: #{tpu_custom_call.1} parent=11 // pred_check_branch
          %536 = sbr.rel (%p534) target = $region36
        $region35: #{tpu_custom_call.1} parent=11 // pred_region
          _
        $region36: #{tpu_custom_call.1} parent=11 // pred_fallthru
          _
        // Predicated region
        $region37: #{tpu_custom_call.1} parent=11 // pred_check
          %p537 = pneg %p303
        $region38: #{tpu_custom_call.1} parent=11 // pred_check_branch
          %539 = sbr.rel (%p537) target = $region40
        $region39: #{tpu_custom_call.1} parent=11 // pred_region
          _
        $region40: #{tpu_custom_call.1} parent=11 // pred_fallthru
          _
        // Predicated region
        $region41: #{tpu_custom_call.1} parent=11 // pred_check
          %p540 = pneg %p324
        $region42: #{tpu_custom_call.1} parent=11 // pred_check_branch
          %542 = sbr.rel (%p540) target = $region44
        $region43: #{tpu_custom_call.1} parent=11 // pred_region
          _
        $region44: #{tpu_custom_call.1} parent=11 // pred_fallthru
          _
        // Predicated region
        $region45: #{tpu_custom_call.1} parent=11 // pred_check
          %p543 = pneg %p345
        $region46: #{tpu_custom_call.1} parent=11 // pred_check_branch
          %545 = sbr.rel (%p543) target = $region48
        $region47: #{tpu_custom_call.1} parent=11 // pred_region
          _
        $region48: #{tpu_custom_call.1} parent=11 // pred_fallthru
          _
        // Predicated region
        $region49: #{tpu_custom_call.1} parent=11 // pred_check
          %p546 = pneg %p366
        $region50: #{tpu_custom_call.1} parent=11 // pred_check_branch
          %548 = sbr.rel (%p546) target = $region52
        $region51: #{tpu_custom_call.1} parent=11 // pred_region
          _
        $region52: #{tpu_custom_call.1} parent=11 // pred_fallthru
          _
        // Predicated region
        $region53: #{tpu_custom_call.1} parent=11 // pred_check
          %p549 = pneg %p387
        $region54: #{tpu_custom_call.1} parent=11 // pred_check_branch
          %551 = sbr.rel (%p549) target = $region56
        $region55: #{tpu_custom_call.1} parent=11 // pred_region
          _
        $region56: #{tpu_custom_call.1} parent=11 // pred_fallthru
          _
        // Predicated region
        $region57: #{tpu_custom_call.1} parent=11 // pred_check
          %p552 = pneg %p408
        $region58: #{tpu_custom_call.1} parent=11 // pred_check_branch
          %554 = sbr.rel (%p552) target = $region60
        $region59: #{tpu_custom_call.1} parent=11 // pred_region
          _
        $region60: #{tpu_custom_call.1} parent=11 // pred_fallthru
          _
        // Predicated region
        $region61: #{tpu_custom_call.1} parent=11 // pred_check
          %p555 = pneg %p429
        $region62: #{tpu_custom_call.1} parent=11 // pred_check_branch
          %557 = sbr.rel (%p555) target = $region64
        $region63: #{tpu_custom_call.1} parent=11 // pred_region
          _
        $region64: #{tpu_custom_call.1} parent=11 // pred_fallthru
          _
        // Predicated region
        $region65: #{tpu_custom_call.1} parent=11 // pred_check
          %p558 = pneg %p450
        $region66: #{tpu_custom_call.1} parent=11 // pred_check_branch
          %560 = sbr.rel (%p558) target = $region68
        $region67: #{tpu_custom_call.1} parent=11 // pred_region
          _
        $region68: #{tpu_custom_call.1} parent=11 // pred_fallthru
          _
      $region12: #{tpu_custom_call.1} parent=5 // pred_fallthru
        _
      %p561 = scmp.lt.s32.totalorder %s32, 2
      // Predicated region
      $region69: #{tpu_custom_call.1} parent=5 // pred_check
        %p562 = pneg %p561
      $region70: #{tpu_custom_call.1} parent=5 // pred_check_branch
        %564 = sbr.rel (%p562) target = $region72
      $region71: #{tpu_custom_call.1} parent=5 // pred_region
        // Predicated region
        $region73: #{tpu_custom_call.1} parent=71 // pred_check
          %p565 = pneg %p66
        $region74: #{tpu_custom_call.1} parent=71 // pred_check_branch
          %567 = sbr.rel (%p565) target = $region76
        $region75: #{tpu_custom_call.1} parent=71 // pred_region
          %s568 = sand.u32 %s56, 1
          %s569 = sand.u32 %s56, 1
          %s570 = smul.addr %s569, 16
          %s571 = scalar_lea.vmem [#allocation4], %s570
          %s572 = sadd.s32 %s39, %s40
          %s573 = smul.addr %s572, 8
          %s574 = scalar_lea.vmem %s0, %s573
          // Predicated region
          $region77: #{tpu_custom_call.1} parent=75 // pred_check
            _
          $region78: #{tpu_custom_call.1} parent=75 // pred_check_branch
            %576 = sbr.rel (0) target = $region80
          $region79: #{tpu_custom_call.1} parent=75 // pred_region
            // Predicated region
            $region81: #{tpu_custom_call.1} parent=79 // pred_check
              _
            $region82: #{tpu_custom_call.1} parent=79 // pred_check_branch
              %578 = sbr.rel (0) target = $region84
            $region83: #{tpu_custom_call.1} parent=79 // pred_region
              // Predicated region
              $region96: #{tpu_custom_call.1} parent=83 // pred_check
                _
              $region97: #{tpu_custom_call.1} parent=83 // pred_check_branch
                %595 = sbr.rel (0) target = $region99
              $region98: #{tpu_custom_call.1} parent=83 // pred_region
                loop: start=0, step=1, limit=1
                $region100: #{tpu_custom_call.1} parent=98 // loop_pre_header
                  _
                $region101: #{tpu_custom_call.1} parent=98 // loop_header
                  %s597 = sphi 0, %s601
                  %p598 = scmp.ge.s32.totalorder %s597, 1
                  %s602 = sphi %s574, %s574
                  %s603 = sphi %s571, %s571
                $region102: #{tpu_custom_call.1} parent=98 // loop_header_branch
                  %600 = sbr.rel (%p598) target = $region106
                $region103: #{tpu_custom_call.1} parent=98 // loop_body
                  %v604 = vld [vmem:[%s602] sm:$0xff]
                  %605 = vst [vmem:[%s603] sm:$0xff] %v604
                  %v606 = vld [vmem:[%s602 + $0x10] sm:$0xff]
                  %607 = vst [vmem:[%s603 + $0x8] sm:$0xff] %v606
                $region104: #{tpu_custom_call.1} parent=98 // loop_footer
                  %s601 = sadd.s32 1, %s597
                $region105: #{tpu_custom_call.1} parent=98 // loop_footer_branch
                  %596 = sbr.rel target = $region101
                $region106: #{tpu_custom_call.1} parent=98 // loop_exit
                  _
              $region99: #{tpu_custom_call.1} parent=83 // pred_fallthru
                _
              // Predicated region
              $region107: #{tpu_custom_call.1} parent=83 // pred_check
                _
              $region108: #{tpu_custom_call.1} parent=83 // pred_check_branch
                %609 = sbr.rel target = $region110
              $region109: #{tpu_custom_call.1} parent=83 // pred_region
                _
              $region110: #{tpu_custom_call.1} parent=83 // pred_fallthru
                _
            $region84: #{tpu_custom_call.1} parent=79 // pred_fallthru
              _
            // Predicated region
            $region85: #{tpu_custom_call.1} parent=79 // pred_check
              _
            $region86: #{tpu_custom_call.1} parent=79 // pred_check_branch
              %580 = sbr.rel target = $region88
            $region87: #{tpu_custom_call.1} parent=79 // pred_region
              loop: start=0, step=1, limit=1
              $region89: #{tpu_custom_call.1} parent=87 // loop_pre_header
                _
              $region90: #{tpu_custom_call.1} parent=87 // loop_header
                %s583 = sphi 0, %s587
                %p584 = scmp.ge.s32.totalorder %s583, 1
                %s588 = sphi %s574, %s574
                %s589 = sphi %s571, %s571
              $region91: #{tpu_custom_call.1} parent=87 // loop_header_branch
                %586 = sbr.rel (%p584) target = $region95
              $region92: #{tpu_custom_call.1} parent=87 // loop_body
                %v590 = vld [vmem:[%s588] sm:$0xff]
                %591 = vst [vmem:[%s589] sm:$0xff] %v590
                %v592 = vld [vmem:[%s588 + $0x10] sm:$0xff]
                %593 = vst [vmem:[%s589 + $0x8] sm:$0xff] %v592
              $region93: #{tpu_custom_call.1} parent=87 // loop_footer
                %s587 = sadd.s32 1, %s583
              $region94: #{tpu_custom_call.1} parent=87 // loop_footer_branch
                %582 = sbr.rel target = $region90
              $region95: #{tpu_custom_call.1} parent=87 // loop_exit
                _
            $region88: #{tpu_custom_call.1} parent=79 // pred_fallthru
              _
          $region80: #{tpu_custom_call.1} parent=75 // pred_fallthru
            _
          %610 = vnop
        $region76: #{tpu_custom_call.1} parent=71 // pred_fallthru
          _
        // Predicated region
        $region111: #{tpu_custom_call.1} parent=71 // pred_check
          %p611 = pneg %p94
        $region112: #{tpu_custom_call.1} parent=71 // pred_check_branch
          %613 = sbr.rel (%p611) target = $region114
        $region113: #{tpu_custom_call.1} parent=71 // pred_region
          %s614 = sadd.s32 %s39, %s40
          %p615 = scmp.lt.s32.totalorder %s614, 1
          %s616 = scalar_select %p615, %s614, 1
          %s617 = smul.addr %s616, 8
          %s618 = scalar_lea.vmem %s1, %s617
          %s619 = sadd.s32 %s39, %s40
        $region114: #{tpu_custom_call.1} parent=71 // pred_fallthru
          _
        // Predicated region
        $region115: #{tpu_custom_call.1} parent=71 // pred_check
          %p620 = pneg %p122
        $region116: #{tpu_custom_call.1} parent=71 // pred_check_branch
          %622 = sbr.rel (%p620) target = $region118
        $region117: #{tpu_custom_call.1} parent=71 // pred_region
          %s623 = sadd.s32 %s39, %s40
          %p624 = scmp.lt.s32.totalorder %s623, 1
          %s625 = scalar_select %p624, %s623, 1
          %s626 = scalar_lea.vmem %s2, %s625
          %s627 = sadd.s32 %s39, %s40
        $region118: #{tpu_custom_call.1} parent=71 // pred_fallthru
          _
        // Predicated region
        $region119: #{tpu_custom_call.1} parent=71 // pred_check
          %p628 = pneg %p150
        $region120: #{tpu_custom_call.1} parent=71 // pred_check_branch
          %630 = sbr.rel (%p628) target = $region122
        $region121: #{tpu_custom_call.1} parent=71 // pred_region
          %s631 = sadd.s32 %s39, %s40
          %p632 = scmp.lt.s32.totalorder %s631, 1
          %s633 = scalar_select %p632, %s631, 1
          %s634 = scalar_lea.vmem %s3, %s633
          %s635 = sadd.s32 %s39, %s40
        $region122: #{tpu_custom_call.1} parent=71 // pred_fallthru
          _
      $region72: #{tpu_custom_call.1} parent=5 // pred_fallthru
        _
      %p636 = scmp.le.s32.totalorder 1, %s32
      %p637 = scmp.lt.s32.totalorder %s32, 3
      %p638 = pnand %p636, %p637
      %p639 = pneg %p638
      // Predicated region
      $region123: #{tpu_custom_call.1} parent=5 // pred_check
        _
      $region124: #{tpu_custom_call.1} parent=5 // pred_check_branch
        %641 = sbr.rel (%p638) target = $region126
      $region125: #{tpu_custom_call.1} parent=5 // pred_region
        %s642 = ssub.s32 %s32, 1
        %s643 = sand.u32 %s59, 1
        %s644 = sand.u32 %s59, 1
        %s645 = smul.addr %s644, 16
        %s646 = scalar_lea.vmem [#allocation4], %s645
        // Predicated region
        $region127: #{tpu_custom_call.1} parent=125 // pred_check
          %p647 = pneg %p72
        $region128: #{tpu_custom_call.1} parent=125 // pred_check_branch
          %649 = sbr.rel (%p647) target = $region130
        $region129: #{tpu_custom_call.1} parent=125 // pred_region
          _
        $region130: #{tpu_custom_call.1} parent=125 // pred_fallthru
          _
        %s650 = sand.u32 %s59, 1
        %s651 = sand.u32 %s59, 1
        %s652 = smul.addr %s651, 16
        %s653 = scalar_lea.vmem [#allocation4], %s652
        %p654 = pneg %p72
        %p655 = pneg %p69
        %s656 = sadd.s32 %s41, %s42
        %p657 = scmp.lt.s32.totalorder %s656, 1
        %s658 = scalar_select %p657, %s656, 1
        %s659 = smul.addr %s658, 8
        %s660 = scalar_lea.vmem %s1, %s659
        %p661 = pneg %p100
        %p662 = pneg %p97
        %s663 = sadd.s32 %s41, %s42
        %p664 = scmp.lt.s32.totalorder %s663, 1
        %s665 = scalar_select %p664, %s663, 1
        %s666 = scalar_lea.vmem %s2, %s665
        %p667 = pneg %p128
        %p668 = pneg %p125
        %s669 = sadd.s32 %s41, %s42
        %p670 = scmp.lt.s32.totalorder %s669, 1
        %s671 = scalar_select %p670, %s669, 1
        %s672 = scalar_lea.vmem %s3, %s671
        %p673 = pneg %p156
        %p674 = pneg %p153
        %p675 = pneg %p177
        %p676 = pneg %p174
        %p677 = pneg %p198
        %p678 = pneg %p195
        %p679 = pneg %p219
        %p680 = pneg %p216
        %p681 = pneg %p240
        %p682 = pneg %p237
        %p683 = pneg %p261
        %p684 = pneg %p258
        %p685 = pneg %p282
        %p686 = pneg %p279
        %p687 = pneg %p303
        %p688 = pneg %p300
        %p689 = pneg %p324
        %p690 = pneg %p321
        %p691 = pneg %p345
        %p692 = pneg %p342
        %p693 = pneg %p366
        %p694 = pneg %p363
        %p695 = pneg %p387
        %p696 = pneg %p384
        %p697 = pneg %p408
        %p698 = pneg %p405
        %p699 = pneg %p429
        %p700 = pneg %p426
        %p701 = pneg %p450
        %p702 = pneg %p447
        %p703 = pneg %p478
        %p704 = pneg %p475
        %s705 = sand.u32 %s465, 1
        %s706 = scalar_lea.sflag [#allocation6], %s705
        %s707 = sand.u32 %s465, 1
        %s708 = smul.addr %s707, 16
        %s709 = scalar_lea.vmem [#allocation5], %s708
        %p710 = pneg %p504
        %p711 = pneg %p501
        %s712 = sand.u32 %s491, 1
        %s713 = scalar_lea.sflag [#allocation8], %s712
        %s714 = sand.u32 %s491, 1
        %s715 = smul.addr %s714, 16
        %s716 = scalar_lea.vmem [#allocation7], %s715
        %s717 = sadd.s32 %s41, %s42
        %s718 = sadd.s32 %s41, %s42
        %p719 = scmp.lt.s32.totalorder %s718, 1
        %s720 = scalar_select %p719, %s718, 1
        %s721 = smul.addr %s720, 8
        %s722 = scalar_lea.vmem %s1, %s721
        %s723 = sadd.s32 %s41, %s42
        %s724 = sadd.s32 %s41, %s42
        %p725 = scmp.lt.s32.totalorder %s724, 1
        %s726 = scalar_select %p725, %s724, 1
        %s727 = scalar_lea.vmem %s2, %s726
        %s728 = sadd.s32 %s41, %s42
        %s729 = sadd.s32 %s41, %s42
        %p730 = scmp.lt.s32.totalorder %s729, 1
        %s731 = scalar_select %p730, %s729, 1
        %s732 = scalar_lea.vmem %s3, %s731
        %s733 = sadd.s32 %s41, %s42
        %s734 = sadd.s32 %s41, %s42
        %p735 = scmp.eq.s32.totalorder %s42, 0
        // Predicated region
        $region131: #{tpu_custom_call.1} parent=125 // pred_check
          %p736 = pneg %p735
        $region132: #{tpu_custom_call.1} parent=125 // pred_check_branch
          %738 = sbr.rel (%p736) target = $region134
        $region133: #{tpu_custom_call.1} parent=125 // pred_region
          %vm739 = vcmask 130048
          %740 = vst.msk [vmem:[%s716] sm:$0xff] %vm739, 0.0
          %741 = vst.msk [vmem:[%s716 + $0x8] sm:$0xff] %vm739, 0.0
          %v742 = vlaneseq
          %v743 = vshrl.u32 %v742, 7
          %v744 = vadd.s32 %v743, 8
          %745 = vst [vmem:[#allocation3] sm:$0xff] %v743
          %746 = vst [vmem:[#allocation3 + $0x8] sm:$0xff] %v744
        $region134: #{tpu_custom_call.1} parent=125 // pred_fallthru
          _
        %v747 = vld [vmem:[%s646] sm:$0xff]
        %v748 = vld [vmem:[%s646 + $0x8] sm:$0xff]
        %v749 = vld [vmem:[%s722] sm:$0xff]
        %v750 = vld [vmem:[%s727] sm:$0x1]
        %v751 = vld [vmem:[%s732] sm:$0x1]
        %v752 = vld [vmem:[%s4] sm:$0xff]
        %v753 = vld [vmem:[%s4 + $0x8] sm:$0xff]
        %v754 = vld [vmem:[#allocation3] sm:$0xff]
        %v755 = vld [vmem:[#allocation3 + $0x8] sm:$0xff]
        %v756 = vlaneseq
        %v757 = vshrl.u32 %v756, 7
        %v758 = vsub.s32 0, %v757
        %v759 = vrot.slane %v750, %v758
        %vm760 = vcmp.eq.s32.totalorder %v754, %v759
        %vm761 = vcmp.eq.s32.totalorder %v755, %v759
        %v762 = vsel %vm760, 1, 0
        %v763 = vsel %vm761, 1, 0
        %v764 = vcvt.s32.f32 %v762
        %v765 = vcvt.s32.f32 %v763
        %v766 = vlaneseq
        %v767 = vshrl.u32 %v766, 7
        %v768 = vsub.s32 0, %v767
        %v769 = vrot.slane %v751, %v768
        %vm770 = vcmp.eq.s32.totalorder %v754, %v769
        %vm771 = vcmp.eq.s32.totalorder %v755, %v769
        %v772 = vsel %vm770, 1, 0
        %v773 = vsel %vm771, 1, 0
        %v774 = vcvt.s32.f32 %v772
        %v775 = vcvt.s32.f32 %v773
        %vm776 = vcmask 130048
        %v778 = vsel %vm776, %v752, 0
        %v781 = vsel %vm776, %v753, 0
        %783 = vmatprep.subr.mxu0 0.0
        %784 = vmatpush1.msra.mxu0 %v764
        %785 = vmatprep.subr.mxu0 0.0
        %786 = vmatpush1.msra.mxu0 %v765
        %787 = vmatprep.subr.mxu0 0.0
        %788 = vmatpush1.msra.mxu0 0.0
        %789 = vmatprep.subr.mxu0 0.0
        %790 = vmatpush1.msra.mxu0 0.0
        %791 = vmatprep.subr.mxu0 0.0
        %792 = vmatpush1.msra.mxu0 0.0
        %793 = vmatprep.subr.mxu0 0.0
        %794 = vmatpush1.msra.mxu0 0.0
        %795 = vmatprep.subr.mxu0 0.0
        %796 = vmatpush1.msra.mxu0 0.0
        %797 = vmatprep.subr.mxu0 0.0
        %798 = vmatpush1.msra.mxu0 0.0
        %799 = vmatprep.subr.mxu0 0.0
        %800 = vmatpush1.msra.mxu0 0.0
        %801 = vmatprep.subr.mxu0 0.0
        %802 = vmatpush1.msra.mxu0 0.0
        %803 = vmatprep.subr.mxu0 0.0
        %804 = vmatpush1.msra.mxu0 0.0
        %805 = vmatprep.subr.mxu0 0.0
        %806 = vmatpush1.msra.mxu0 0.0
        %807 = vmatprep.subr.mxu0 0.0
        %808 = vmatpush1.msra.mxu0 0.0
        %809 = vmatprep.subr.mxu0 0.0
        %810 = vmatpush1.msra.mxu0 0.0
        %811 = vmatprep.subr.mxu0 0.0
        %812 = vmatpush1.msra.mxu0 0.0
        %813 = vmatprep.subr.mxu0 0.0
        %814 = vmatpush1.msra.mxu0 0.0
        %815 = vmatprep.subr.mxu0 0.0
        %816 = vmatpush1.msra.mxu0 0.0
        %817 = vmatprep.subr.mxu0 0.0
        %818 = vmatpush1.msra.mxu0 0.0
        %819 = vmatprep.subr.mxu0 0.0
        %820 = vmatpush1.msra.mxu0 0.0
        %821 = vmatprep.subr.mxu0 0.0
        %822 = vmatpush1.msra.mxu0 0.0
        %823 = vmatprep.subr.mxu0 0.0
        %824 = vmatpush1.msra.mxu0 0.0
        %825 = vmatprep.subr.mxu0 0.0
        %826 = vmatpush1.msra.mxu0 0.0
        %827 = vmatprep.subr.mxu0 0.0
        %828 = vmatpush1.msra.mxu0 0.0
        %829 = vmatprep.subr.mxu0 0.0
        %830 = vmatpush1.msra.mxu0 0.0
        %831 = vmatprep.subr.mxu0 0.0
        %832 = vmatpush1.msra.mxu0 0.0
        %833 = vmatprep.subr.mxu0 0.0
        %834 = vmatpush1.msra.mxu0 0.0
        %835 = vmatprep.subr.mxu0 0.0
        %836 = vmatpush1.msra.mxu0 0.0
        %837 = vmatprep.subr.mxu0 0.0
        %838 = vmatpush1.msra.mxu0 0.0
        %839 = vmatprep.subr.mxu0 0.0
        %840 = vmatpush1.msra.mxu0 0.0
        %841 = vmatprep.subr.mxu0 0.0
        %842 = vmatpush1.msra.mxu0 0.0
        %843 = vmatprep.subr.mxu0 0.0
        %844 = vmatpush1.msra.mxu0 0.0
        %845 = vmatprep.subr.mxu0 0.0
        %846 = vmatpush1.msra.mxu0 0.0
        %847 = vmatprep.mubr.f32.mxu0 0.0
        %848 = vmatmul.mubr.f32.gmra.mrb[0].mxu0 %v778
        %v849 = vpop.f32.mrb[0].mxu0
        %v850 = vadd.f32 0.0, %v849
        %v851 = vpop.f32.mrb[0].mxu0
        %852 = vmatprep.mubr.f32.mxu0 0.0
        %853 = vmatmul.mubr.f32.gmra.mrb[0].mxu0 %v781
        %v854 = vpop.f32.mrb[0].mxu0
        %v855 = vadd.f32 0.0, %v854
        %v856 = vpop.f32.mrb[0].mxu0
        %857 = vdwg.mxu0
        %858 = vmatprep.subr.mxu0 0.0
        %859 = vmatpush1.msra.mxu0 %v774
        %860 = vmatprep.subr.mxu0 0.0
        %861 = vmatpush1.msra.mxu0 %v775
        %862 = vmatprep.subr.mxu0 0.0
        %863 = vmatpush1.msra.mxu0 0.0
        %864 = vmatprep.subr.mxu0 0.0
        %865 = vmatpush1.msra.mxu0 0.0
        %866 = vmatprep.subr.mxu0 0.0
        %867 = vmatpush1.msra.mxu0 0.0
        %868 = vmatprep.subr.mxu0 0.0
        %869 = vmatpush1.msra.mxu0 0.0
        %870 = vmatprep.subr.mxu0 0.0
        %871 = vmatpush1.msra.mxu0 0.0
        %872 = vmatprep.subr.mxu0 0.0
        %873 = vmatpush1.msra.mxu0 0.0
        %874 = vmatprep.subr.mxu0 0.0
        %875 = vmatpush1.msra.mxu0 0.0
        %876 = vmatprep.subr.mxu0 0.0
        %877 = vmatpush1.msra.mxu0 0.0
        %878 = vmatprep.subr.mxu0 0.0
        %879 = vmatpush1.msra.mxu0 0.0
        %880 = vmatprep.subr.mxu0 0.0
        %881 = vmatpush1.msra.mxu0 0.0
        %882 = vmatprep.subr.mxu0 0.0
        %883 = vmatpush1.msra.mxu0 0.0
        %884 = vmatprep.subr.mxu0 0.0
        %885 = vmatpush1.msra.mxu0 0.0
        %886 = vmatprep.subr.mxu0 0.0
        %887 = vmatpush1.msra.mxu0 0.0
        %888 = vmatprep.subr.mxu0 0.0
        %889 = vmatpush1.msra.mxu0 0.0
        %890 = vmatprep.subr.mxu0 0.0
        %891 = vmatpush1.msra.mxu0 0.0
        %892 = vmatprep.subr.mxu0 0.0
        %893 = vmatpush1.msra.mxu0 0.0
        %894 = vmatprep.subr.mxu0 0.0
        %895 = vmatpush1.msra.mxu0 0.0
        %896 = vmatprep.subr.mxu0 0.0
        %897 = vmatpush1.msra.mxu0 0.0
        %898 = vmatprep.subr.mxu0 0.0
        %899 = vmatpush1.msra.mxu0 0.0
        %900 = vmatprep.subr.mxu0 0.0
        %901 = vmatpush1.msra.mxu0 0.0
        %902 = vmatprep.subr.mxu0 0.0
        %903 = vmatpush1.msra.mxu0 0.0
        %904 = vmatprep.subr.mxu0 0.0
        %905 = vmatpush1.msra.mxu0 0.0
        %906 = vmatprep.subr.mxu0 0.0
        %907 = vmatpush1.msra.mxu0 0.0
        %908 = vmatprep.subr.mxu0 0.0
        %909 = vmatpush1.msra.mxu0 0.0
        %910 = vmatprep.subr.mxu0 0.0
        %911 = vmatpush1.msra.mxu0 0.0
        %912 = vmatprep.subr.mxu0 0.0
        %913 = vmatpush1.msra.mxu0 0.0
        %914 = vmatprep.subr.mxu0 0.0
        %915 = vmatpush1.msra.mxu0 0.0
        %916 = vmatprep.subr.mxu0 0.0
        %917 = vmatpush1.msra.mxu0 0.0
        %918 = vmatprep.subr.mxu0 0.0
        %919 = vmatpush1.msra.mxu0 0.0
        %920 = vmatprep.subr.mxu0 0.0
        %921 = vmatpush1.msra.mxu0 0.0
        %922 = vmatprep.mubr.f32.mxu0 0.0
        %923 = vmatmul.mubr.f32.gmra.mrb[0].mxu0 %v778
        %v924 = vpop.f32.mrb[0].mxu0
        %v925 = vadd.f32 0.0, %v924
        %v926 = vpop.f32.mrb[0].mxu0
        %927 = vmatprep.mubr.f32.mxu0 0.0
        %928 = vmatmul.mubr.f32.gmra.mrb[0].mxu0 %v781
        %v929 = vpop.f32.mrb[0].mxu0
        %v930 = vadd.f32 0.0, %v929
        %v931 = vpop.f32.mrb[0].mxu0
        %932 = vdwg.mxu0
        %v933 = vld [vmem:[%s17] sm:$0xff]
        %v934 = vld [vmem:[%s17 + $0x8] sm:$0xff]
        %v935 = vld [vmem:[%s17 + $0x10] sm:$0xff]
        %v936 = vld [vmem:[%s17 + $0x18] sm:$0xff]
        %vm937 = vcmask 64512
        %v939 = vsel %vm937, %v933, 0
        %v942 = vsel %vm937, %v934, 0
        %v945 = vsel %vm937, %v935, 0
        %v948 = vsel %vm937, %v936, 0
        %950 = vmatprep.subr.mxu0 0.0
        %951 = vmatpush1.msra.mxu0 %v749
        %952 = vmatprep.subr.mxu0 0.0
        %953 = vmatpush1.msra.mxu0 0.0
        %954 = vmatprep.subr.mxu0 0.0
        %955 = vmatpush1.msra.mxu0 0.0
        %956 = vmatprep.subr.mxu0 0.0
        %957 = vmatpush1.msra.mxu0 0.0
        %958 = vmatprep.subr.mxu0 0.0
        %959 = vmatpush1.msra.mxu0 0.0
        %960 = vmatprep.subr.mxu0 0.0
        %961 = vmatpush1.msra.mxu0 0.0
        %962 = vmatprep.subr.mxu0 0.0
        %963 = vmatpush1.msra.mxu0 0.0
        %964 = vmatprep.subr.mxu0 0.0
        %965 = vmatpush1.msra.mxu0 0.0
        %966 = vmatprep.subr.mxu0 0.0
        %967 = vmatpush1.msra.mxu0 0.0
        %968 = vmatprep.subr.mxu0 0.0
        %969 = vmatpush1.msra.mxu0 0.0
        %970 = vmatprep.subr.mxu0 0.0
        %971 = vmatpush1.msra.mxu0 0.0
        %972 = vmatprep.subr.mxu0 0.0
        %973 = vmatpush1.msra.mxu0 0.0
        %974 = vmatprep.subr.mxu0 0.0
        %975 = vmatpush1.msra.mxu0 0.0
        %976 = vmatprep.subr.mxu0 0.0
        %977 = vmatpush1.msra.mxu0 0.0
        %978 = vmatprep.subr.mxu0 0.0
        %979 = vmatpush1.msra.mxu0 0.0
        %980 = vmatprep.subr.mxu0 0.0
        %981 = vmatpush1.msra.mxu0 0.0
        %982 = vmatprep.subr.mxu0 0.0
        %983 = vmatpush1.msra.mxu0 0.0
        %984 = vmatprep.subr.mxu0 0.0
        %985 = vmatpush1.msra.mxu0 0.0
        %986 = vmatprep.subr.mxu0 0.0
        %987 = vmatpush1.msra.mxu0 0.0
        %988 = vmatprep.subr.mxu0 0.0
        %989 = vmatpush1.msra.mxu0 0.0
        %990 = vmatprep.subr.mxu0 0.0
        %991 = vmatpush1.msra.mxu0 0.0
        %992 = vmatprep.subr.mxu0 0.0
        %993 = vmatpush1.msra.mxu0 0.0
        %994 = vmatprep.subr.mxu0 0.0
        %995 = vmatpush1.msra.mxu0 0.0
        %996 = vmatprep.subr.mxu0 0.0
        %997 = vmatpush1.msra.mxu0 0.0
        %998 = vmatprep.subr.mxu0 0.0
        %999 = vmatpush1.msra.mxu0 0.0
        %1000 = vmatprep.subr.mxu0 0.0
        %1001 = vmatpush1.msra.mxu0 0.0
        %1002 = vmatprep.subr.mxu0 0.0
        %1003 = vmatpush1.msra.mxu0 0.0
        %1004 = vmatprep.subr.mxu0 0.0
        %1005 = vmatpush1.msra.mxu0 0.0
        %1006 = vmatprep.subr.mxu0 0.0
        %1007 = vmatpush1.msra.mxu0 0.0
        %1008 = vmatprep.subr.mxu0 0.0
        %1009 = vmatpush1.msra.mxu0 0.0
        %1010 = vmatprep.subr.mxu0 0.0
        %1011 = vmatpush1.msra.mxu0 0.0
        %1012 = vmatprep.subr.mxu0 0.0
        %1013 = vmatpush1.msra.mxu0 0.0
        %1014 = vmatprep.mubr.f32.mxu0 0.0
        %1015 = vmatmul.mubr.f32.gmra.mrb[0].mxu0 %v939
        %v1016 = vpop.f32.mrb[0].mxu0
        %v1017 = vadd.f32 0.0, %v1016
        %v1018 = vpop.f32.mrb[0].mxu0
        %1019 = vmatprep.mubr.f32.mxu0 0.0
        %1020 = vmatmul.mubr.f32.gmra.mrb[0].mxu0 %v942
        %v1021 = vpop.f32.mrb[0].mxu0
        %v1022 = vadd.f32 0.0, %v1021
        %v1023 = vpop.f32.mrb[0].mxu0
        %1024 = vmatprep.mubr.f32.mxu0 0.0
        %1025 = vmatmul.mubr.f32.gmra.mrb[0].mxu0 %v945
        %v1026 = vpop.f32.mrb[0].mxu0
        %v1027 = vadd.f32 0.0, %v1026
        %v1028 = vpop.f32.mrb[0].mxu0
        %1029 = vmatprep.mubr.f32.mxu0 0.0
        %1030 = vmatmul.mubr.f32.gmra.mrb[0].mxu0 %v948
        %v1031 = vpop.f32.mrb[0].mxu0
        %v1032 = vadd.f32 0.0, %v1031
        %v1033 = vpop.f32.mrb[0].mxu0
        %1034 = vdwg.mxu0
        %1035 = vst [vmem:[#allocation2] sm:$0xff] %v850
        %1036 = vst [vmem:[#allocation2 + $0x8] sm:$0xff] %v855
        %1037 = vst [vmem:[#allocation2 + $0x10] sm:$0xff] %v925
        %1038 = vst [vmem:[#allocation2 + $0x18] sm:$0xff] %v930
        %1039 = vst [vmem:[#allocation2 + $0x20] sm:$0xff] %v747
        %1040 = vst [vmem:[#allocation2 + $0x28] sm:$0xff] %v748
        %v1041 = vld [vmem:[%s5] sm:$0xff]
        %v1042 = vld [vmem:[%s5 + $0x8] sm:$0xff]
        %v1043 = vld [vmem:[%s5 + $0x10] sm:$0xff]
        %v1044 = vld [vmem:[%s5 + $0x18] sm:$0xff]
        %v1045 = vld [vmem:[%s5 + $0x20] sm:$0xff]
        %v1046 = vld [vmem:[%s5 + $0x28] sm:$0xff]
        %v1047 = vld [vmem:[%s5 + $0x30] sm:$0xff]
        %v1048 = vld [vmem:[%s5 + $0x38] sm:$0xff]
        %v1049 = vld [vmem:[#allocation2] sm:$0xff]
        %v1050 = vld [vmem:[#allocation2 + $0x8] sm:$0xff]
        %v1051 = vld [vmem:[#allocation2 + $0x10] sm:$0xff]
        %v1052 = vld [vmem:[#allocation2 + $0x18] sm:$0xff]
        %v1053 = vld [vmem:[#allocation2 + $0x20] sm:$0xff]
        %v1054 = vld [vmem:[#allocation2 + $0x28] sm:$0xff]
        %v1055 = vld [vmem:[%s6] sm:$0xff]
        %v1056 = vld [vmem:[%s6 + $0x8] sm:$0xff]
        %v1057 = vld [vmem:[%s6 + $0x10] sm:$0xff]
        %v1058 = vld [vmem:[%s6 + $0x18] sm:$0xff]
        %v1059 = vld [vmem:[%s6 + $0x20] sm:$0xff]
        %v1060 = vld [vmem:[%s6 + $0x28] sm:$0xff]
        %v1061 = vld [vmem:[%s6 + $0x30] sm:$0xff]
        %v1062 = vld [vmem:[%s6 + $0x38] sm:$0xff]
        %1064 = vset.pattern.permute.xlu0 0
        %1065 = vperm.xlu0 %1064, %v1055
        %v1066 = vpop.permute.xlu0 %1065
        %1069 = vset.pattern.permute.xlu0 0
        %1070 = vperm.xlu0 %1069, %v1056
        %v1071 = vpop.permute.xlu0 %1070
        %1074 = vset.pattern.permute.xlu0 0
        %1075 = vperm.xlu0 %1074, %v1057
        %v1076 = vpop.permute.xlu0 %1075
        %1079 = vset.pattern.permute.xlu0 0
        %1080 = vperm.xlu0 %1079, %v1058
        %v1081 = vpop.permute.xlu0 %1080
        %1084 = vset.pattern.permute.xlu0 0
        %1085 = vperm.xlu0 %1084, %v1059
        %v1086 = vpop.permute.xlu0 %1085
        %1089 = vset.pattern.permute.xlu0 0
        %1090 = vperm.xlu0 %1089, %v1060
        %v1091 = vpop.permute.xlu0 %1090
        %1094 = vset.pattern.permute.xlu0 0
        %1095 = vperm.xlu0 %1094, %v1061
        %v1096 = vpop.permute.xlu0 %1095
        %1099 = vset.pattern.permute.xlu0 0
        %1100 = vperm.xlu0 %1099, %v1062
        %v1101 = vpop.permute.xlu0 %1100
        %vm1103 = vcmask 392192
        %v1105 = vsel %vm1103, %v1041, 0
        %v1108 = vsel %vm1103, %v1042, 0
        %v1111 = vsel %vm1103, %v1043, 0
        %v1114 = vsel %vm1103, %v1044, 0
        %v1117 = vsel %vm1103, %v1045, 0
        %v1120 = vsel %vm1103, %v1046, 0
        %v1123 = vsel %vm1103, %v1047, 0
        %v1126 = vsel %vm1103, %v1048, 0
        %1128 = vmatprep.subr.mxu0 0.0
        %1129 = vmatpush1.msra.mxu0 %v1049
        %1130 = vmatprep.subr.mxu0 0.0
        %1131 = vmatpush1.msra.mxu0 %v1050
        %1132 = vmatprep.subr.mxu0 0.0
        %1133 = vmatpush1.msra.mxu0 %v1051
        %1134 = vmatprep.subr.mxu0 0.0
        %1135 = vmatpush1.msra.mxu0 %v1052
        %1136 = vmatprep.subr.mxu0 0.0
        %1137 = vmatpush1.msra.mxu0 %v1053
        %1138 = vmatprep.subr.mxu0 0.0
        %1139 = vmatpush1.msra.mxu0 %v1054
        %1140 = vmatprep.subr.mxu0 0.0
        %1141 = vmatpush1.msra.mxu0 0.0
        %1142 = vmatprep.subr.mxu0 0.0
        %1143 = vmatpush1.msra.mxu0 0.0
        %1144 = vmatprep.subr.mxu0 0.0
        %1145 = vmatpush1.msra.mxu0 0.0
        %1146 = vmatprep.subr.mxu0 0.0
        %1147 = vmatpush1.msra.mxu0 0.0
        %1148 = vmatprep.subr.mxu0 0.0
        %1149 = vmatpush1.msra.mxu0 0.0
        %1150 = vmatprep.subr.mxu0 0.0
        %1151 = vmatpush1.msra.mxu0 0.0
        %1152 = vmatprep.subr.mxu0 0.0
        %1153 = vmatpush1.msra.mxu0 0.0
        %1154 = vmatprep.subr.mxu0 0.0
        %1155 = vmatpush1.msra.mxu0 0.0
        %1156 = vmatprep.subr.mxu0 0.0
        %1157 = vmatpush1.msra.mxu0 0.0
        %1158 = vmatprep.subr.mxu0 0.0
        %1159 = vmatpush1.msra.mxu0 0.0
        %1160 = vmatprep.subr.mxu0 0.0
        %1161 = vmatpush1.msra.mxu0 0.0
        %1162 = vmatprep.subr.mxu0 0.0
        %1163 = vmatpush1.msra.mxu0 0.0
        %1164 = vmatprep.subr.mxu0 0.0
        %1165 = vmatpush1.msra.mxu0 0.0
        %1166 = vmatprep.subr.mxu0 0.0
        %1167 = vmatpush1.msra.mxu0 0.0
        %1168 = vmatprep.subr.mxu0 0.0
        %1169 = vmatpush1.msra.mxu0 0.0
        %1170 = vmatprep.subr.mxu0 0.0
        %1171 = vmatpush1.msra.mxu0 0.0
        %1172 = vmatprep.subr.mxu0 0.0
        %1173 = vmatpush1.msra.mxu0 0.0
        %1174 = vmatprep.subr.mxu0 0.0
        %1175 = vmatpush1.msra.mxu0 0.0
        %1176 = vmatprep.subr.mxu0 0.0
        %1177 = vmatpush1.msra.mxu0 0.0
        %1178 = vmatprep.subr.mxu0 0.0
        %1179 = vmatpush1.msra.mxu0 0.0
        %1180 = vmatprep.subr.mxu0 0.0
        %1181 = vmatpush1.msra.mxu0 0.0
        %1182 = vmatprep.subr.mxu0 0.0
        %1183 = vmatpush1.msra.mxu0 0.0
        %1184 = vmatprep.subr.mxu0 0.0
        %1185 = vmatpush1.msra.mxu0 0.0
        %1186 = vmatprep.subr.mxu0 0.0
        %1187 = vmatpush1.msra.mxu0 0.0
        %1188 = vmatprep.subr.mxu0 0.0
        %1189 = vmatpush1.msra.mxu0 0.0
        %1190 = vmatprep.subr.mxu0 0.0
        %1191 = vmatpush1.msra.mxu0 0.0
        %1192 = vmatprep.mubr.f32.mxu0 0.0
        %1193 = vmatmul.mubr.f32.gmra.mrb[0].mxu0 %v1105
        %v1194 = vpop.f32.mrb[0].mxu0
        %v1195 = vadd.f32 %v1066, %v1194
        %v1196 = vpop.f32.mrb[0].mxu0
        %1197 = vmatprep.mubr.f32.mxu0 0.0
        %1198 = vmatmul.mubr.f32.gmra.mrb[0].mxu0 %v1108
        %v1199 = vpop.f32.mrb[0].mxu0
        %v1200 = vadd.f32 %v1071, %v1199
        %v1201 = vpop.f32.mrb[0].mxu0
        %1202 = vmatprep.mubr.f32.mxu0 0.0
        %1203 = vmatmul.mubr.f32.gmra.mrb[0].mxu0 %v1111
        %v1204 = vpop.f32.mrb[0].mxu0
        %v1205 = vadd.f32 %v1076, %v1204
        %v1206 = vpop.f32.mrb[0].mxu0
        %1207 = vmatprep.mubr.f32.mxu0 0.0
        %1208 = vmatmul.mubr.f32.gmra.mrb[0].mxu0 %v1114
        %v1209 = vpop.f32.mrb[0].mxu0
        %v1210 = vadd.f32 %v1081, %v1209
        %v1211 = vpop.f32.mrb[0].mxu0
        %1212 = vmatprep.mubr.f32.mxu0 0.0
        %1213 = vmatmul.mubr.f32.gmra.mrb[0].mxu0 %v1117
        %v1214 = vpop.f32.mrb[0].mxu0
        %v1215 = vadd.f32 %v1086, %v1214
        %v1216 = vpop.f32.mrb[0].mxu0
        %1217 = vmatprep.mubr.f32.mxu0 0.0
        %1218 = vmatmul.mubr.f32.gmra.mrb[0].mxu0 %v1120
        %v1219 = vpop.f32.mrb[0].mxu0
        %v1220 = vadd.f32 %v1091, %v1219
        %v1221 = vpop.f32.mrb[0].mxu0
        %1222 = vmatprep.mubr.f32.mxu0 0.0
        %1223 = vmatmul.mubr.f32.gmra.mrb[0].mxu0 %v1123
        %v1224 = vpop.f32.mrb[0].mxu0
        %v1225 = vadd.f32 %v1096, %v1224
        %v1226 = vpop.f32.mrb[0].mxu0
        %1227 = vmatprep.mubr.f32.mxu0 0.0
        %1228 = vmatmul.mubr.f32.gmra.mrb[0].mxu0 %v1126
        %v1229 = vpop.f32.mrb[0].mxu0
        %v1230 = vadd.f32 %v1101, %v1229
        %v1231 = vpop.f32.mrb[0].mxu0
        %1232 = vdwg.mxu0
        %v1233 = vxor.u32 %v1195, 2147483648
        %v1234 = vxor.u32 %v1200, 2147483648
        %v1235 = vxor.u32 %v1205, 2147483648
        %v1236 = vxor.u32 %v1210, 2147483648
        %v1237 = vxor.u32 %v1215, 2147483648
        %v1238 = vxor.u32 %v1220, 2147483648
        %v1239 = vxor.u32 %v1225, 2147483648
        %v1240 = vxor.u32 %v1230, 2147483648
        %v1241 = vmul.f32 %v1233, 1.442695
        %v1242 = vpow.pop %v1241
        %v1243 = vmul.f32 %v1234, 1.442695
        %v1244 = vpow.pop %v1243
        %v1245 = vmul.f32 %v1235, 1.442695
        %v1246 = vpow.pop %v1245
        %v1247 = vmul.f32 %v1236, 1.442695
        %v1248 = vpow.pop %v1247
        %v1249 = vmul.f32 %v1237, 1.442695
        %v1250 = vpow.pop %v1249
        %v1251 = vmul.f32 %v1238, 1.442695
        %v1252 = vpow.pop %v1251
        %v1253 = vmul.f32 %v1239, 1.442695
        %v1254 = vpow.pop %v1253
        %v1255 = vmul.f32 %v1240, 1.442695
        %v1256 = vpow.pop %v1255
        %v1257 = vadd.f32 %v1242, 1.0
        %v1258 = vadd.f32 %v1244, 1.0
        %v1259 = vadd.f32 %v1246, 1.0
        %v1260 = vadd.f32 %v1248, 1.0
        %v1261 = vadd.f32 %v1250, 1.0
        %v1262 = vadd.f32 %v1252, 1.0
        %v1263 = vadd.f32 %v1254, 1.0
        %v1264 = vadd.f32 %v1256, 1.0
        %v1265 = vrcp.pop %v1257
        %v1266 = vmul.f32 1.0, %v1265
        %v1267 = vrcp.pop %v1258
        %v1268 = vmul.f32 1.0, %v1267
        %v1269 = vrcp.pop %v1259
        %v1270 = vmul.f32 1.0, %v1269
        %v1271 = vrcp.pop %v1260
        %v1272 = vmul.f32 1.0, %v1271
        %v1273 = vrcp.pop %v1261
        %v1274 = vmul.f32 1.0, %v1273
        %v1275 = vrcp.pop %v1262
        %v1276 = vmul.f32 1.0, %v1275
        %v1277 = vrcp.pop %v1263
        %v1278 = vmul.f32 1.0, %v1277
        %v1279 = vrcp.pop %v1264
        %v1280 = vmul.f32 1.0, %v1279
        %v1281 = vmul.f32 %v1195, %v1266
        %v1282 = vmul.f32 %v1200, %v1268
        %v1283 = vmul.f32 %v1205, %v1270
        %v1284 = vmul.f32 %v1210, %v1272
        %v1285 = vmul.f32 %v1215, %v1274
        %v1286 = vmul.f32 %v1220, %v1276
        %v1287 = vmul.f32 %v1225, %v1278
        %v1288 = vmul.f32 %v1230, %v1280
        %v1289 = vld [vmem:[%s7] sm:$0xff]
        %v1290 = vld [vmem:[%s7 + $0x8] sm:$0xff]
        %v1291 = vld [vmem:[%s8] sm:$0xff]
        %v1292 = vld [vmem:[%s8 + $0x8] sm:$0xff]
        %1294 = vset.pattern.permute.xlu0 0
        %1295 = vperm.xlu0 %1294, %v1291
        %v1296 = vpop.permute.xlu0 %1295
        %1299 = vset.pattern.permute.xlu0 0
        %1300 = vperm.xlu0 %1299, %v1292
        %v1301 = vpop.permute.xlu0 %1300
        %vm1303 = vcmask 261120
        %v1305 = vsel %vm1303, %v1289, 0
        %v1308 = vsel %vm1303, %v1290, 0
        %1310 = vmatprep.subr.mxu0 0.0
        %1311 = vmatpush1.msra.mxu0 %v1281
        %1312 = vmatprep.subr.mxu0 0.0
        %1313 = vmatpush1.msra.mxu0 %v1282
        %1314 = vmatprep.subr.mxu0 0.0
        %1315 = vmatpush1.msra.mxu0 %v1283
        %1316 = vmatprep.subr.mxu0 0.0
        %1317 = vmatpush1.msra.mxu0 %v1284
        %1318 = vmatprep.subr.mxu0 0.0
        %1319 = vmatpush1.msra.mxu0 0.0
        %1320 = vmatprep.subr.mxu0 0.0
        %1321 = vmatpush1.msra.mxu0 0.0
        %1322 = vmatprep.subr.mxu0 0.0
        %1323 = vmatpush1.msra.mxu0 0.0
        %1324 = vmatprep.subr.mxu0 0.0
        %1325 = vmatpush1.msra.mxu0 0.0
        %1326 = vmatprep.subr.mxu0 0.0
        %1327 = vmatpush1.msra.mxu0 0.0
        %1328 = vmatprep.subr.mxu0 0.0
        %1329 = vmatpush1.msra.mxu0 0.0
        %1330 = vmatprep.subr.mxu0 0.0
        %1331 = vmatpush1.msra.mxu0 0.0
        %1332 = vmatprep.subr.mxu0 0.0
        %1333 = vmatpush1.msra.mxu0 0.0
        %1334 = vmatprep.subr.mxu0 0.0
        %1335 = vmatpush1.msra.mxu0 0.0
        %1336 = vmatprep.subr.mxu0 0.0
        %1337 = vmatpush1.msra.mxu0 0.0
        %1338 = vmatprep.subr.mxu0 0.0
        %1339 = vmatpush1.msra.mxu0 0.0
        %1340 = vmatprep.subr.mxu0 0.0
        %1341 = vmatpush1.msra.mxu0 0.0
        %1342 = vmatprep.subr.mxu0 0.0
        %1343 = vmatpush1.msra.mxu0 0.0
        %1344 = vmatprep.subr.mxu0 0.0
        %1345 = vmatpush1.msra.mxu0 0.0
        %1346 = vmatprep.subr.mxu0 0.0
        %1347 = vmatpush1.msra.mxu0 0.0
        %1348 = vmatprep.subr.mxu0 0.0
        %1349 = vmatpush1.msra.mxu0 0.0
        %1350 = vmatprep.subr.mxu0 0.0
        %1351 = vmatpush1.msra.mxu0 0.0
        %1352 = vmatprep.subr.mxu0 0.0
        %1353 = vmatpush1.msra.mxu0 0.0
        %1354 = vmatprep.subr.mxu0 0.0
        %1355 = vmatpush1.msra.mxu0 0.0
        %1356 = vmatprep.subr.mxu0 0.0
        %1357 = vmatpush1.msra.mxu0 0.0
        %1358 = vmatprep.subr.mxu0 0.0
        %1359 = vmatpush1.msra.mxu0 0.0
        %1360 = vmatprep.subr.mxu0 0.0
        %1361 = vmatpush1.msra.mxu0 0.0
        %1362 = vmatprep.subr.mxu0 0.0
        %1363 = vmatpush1.msra.mxu0 0.0
        %1364 = vmatprep.subr.mxu0 0.0
        %1365 = vmatpush1.msra.mxu0 0.0
        %1366 = vmatprep.subr.mxu0 0.0
        %1367 = vmatpush1.msra.mxu0 0.0
        %1368 = vmatprep.subr.mxu0 0.0
        %1369 = vmatpush1.msra.mxu0 0.0
        %1370 = vmatprep.subr.mxu0 0.0
        %1371 = vmatpush1.msra.mxu0 0.0
        %1372 = vmatprep.subr.mxu0 0.0
        %1373 = vmatpush1.msra.mxu0 0.0
        %1374 = vmatprep.mubr.f32.mxu0 0.0
        %1375 = vmatmul.mubr.f32.gmra.mrb[0].mxu0 %v1305
        %v1376 = vpop.f32.mrb[0].mxu0
        %v1377 = vadd.f32 %v1296, %v1376
        %v1378 = vpop.f32.mrb[0].mxu0
        %1379 = vmatprep.mubr.f32.mxu0 0.0
        %1380 = vmatmul.mubr.f32.gmra.mrb[0].mxu0 %v1308
        %v1381 = vpop.f32.mrb[0].mxu0
        %v1382 = vadd.f32 %v1301, %v1381
        %v1383 = vpop.f32.mrb[0].mxu0
        %1384 = vdwg.mxu0
        %v1385 = vxor.u32 %v1377, 2147483648
        %v1386 = vxor.u32 %v1382, 2147483648
        %v1387 = vmul.f32 %v1385, 1.442695
        %v1388 = vpow.pop %v1387
        %v1389 = vmul.f32 %v1386, 1.442695
        %v1390 = vpow.pop %v1389
        %v1391 = vadd.f32 %v1388, 1.0
        %v1392 = vadd.f32 %v1390, 1.0
        %v1393 = vrcp.pop %v1391
        %v1394 = vmul.f32 1.0, %v1393
        %v1395 = vrcp.pop %v1392
        %v1396 = vmul.f32 1.0, %v1395
        %v1397 = vmul.f32 %v1377, %v1394
        %v1398 = vmul.f32 %v1382, %v1396
        %v1399 = vld [vmem:[%s9] sm:$0xff]
        %v1400 = vld [vmem:[%s9 + $0x8] sm:$0xff]
        %v1401 = vld [vmem:[%s10] sm:$0xff]
        %v1402 = vld [vmem:[%s10 + $0x8] sm:$0xff]
        %1404 = vset.pattern.permute.xlu0 0
        %1405 = vperm.xlu0 %1404, %v1401
        %v1406 = vpop.permute.xlu0 %1405
        %1409 = vset.pattern.permute.xlu0 0
        %1410 = vperm.xlu0 %1409, %v1402
        %v1411 = vpop.permute.xlu0 %1410
        %v1414 = vsel %vm1303, %v1399, 0
        %v1417 = vsel %vm1303, %v1400, 0
        %1419 = vmatprep.subr.mxu0 0.0
        %1420 = vmatpush1.msra.mxu0 %v1285
        %1421 = vmatprep.subr.mxu0 0.0
        %1422 = vmatpush1.msra.mxu0 %v1286
        %1423 = vmatprep.subr.mxu0 0.0
        %1424 = vmatpush1.msra.mxu0 %v1287
        %1425 = vmatprep.subr.mxu0 0.0
        %1426 = vmatpush1.msra.mxu0 %v1288
        %1427 = vmatprep.subr.mxu0 0.0
        %1428 = vmatpush1.msra.mxu0 0.0
        %1429 = vmatprep.subr.mxu0 0.0
        %1430 = vmatpush1.msra.mxu0 0.0
        %1431 = vmatprep.subr.mxu0 0.0
        %1432 = vmatpush1.msra.mxu0 0.0
        %1433 = vmatprep.subr.mxu0 0.0
        %1434 = vmatpush1.msra.mxu0 0.0
        %1435 = vmatprep.subr.mxu0 0.0
        %1436 = vmatpush1.msra.mxu0 0.0
        %1437 = vmatprep.subr.mxu0 0.0
        %1438 = vmatpush1.msra.mxu0 0.0
        %1439 = vmatprep.subr.mxu0 0.0
        %1440 = vmatpush1.msra.mxu0 0.0
        %1441 = vmatprep.subr.mxu0 0.0
        %1442 = vmatpush1.msra.mxu0 0.0
        %1443 = vmatprep.subr.mxu0 0.0
        %1444 = vmatpush1.msra.mxu0 0.0
        %1445 = vmatprep.subr.mxu0 0.0
        %1446 = vmatpush1.msra.mxu0 0.0
        %1447 = vmatprep.subr.mxu0 0.0
        %1448 = vmatpush1.msra.mxu0 0.0
        %1449 = vmatprep.subr.mxu0 0.0
        %1450 = vmatpush1.msra.mxu0 0.0
        %1451 = vmatprep.subr.mxu0 0.0
        %1452 = vmatpush1.msra.mxu0 0.0
        %1453 = vmatprep.subr.mxu0 0.0
        %1454 = vmatpush1.msra.mxu0 0.0
        %1455 = vmatprep.subr.mxu0 0.0
        %1456 = vmatpush1.msra.mxu0 0.0
        %1457 = vmatprep.subr.mxu0 0.0
        %1458 = vmatpush1.msra.mxu0 0.0
        %1459 = vmatprep.subr.mxu0 0.0
        %1460 = vmatpush1.msra.mxu0 0.0
        %1461 = vmatprep.subr.mxu0 0.0
        %1462 = vmatpush1.msra.mxu0 0.0
        %1463 = vmatprep.subr.mxu0 0.0
        %1464 = vmatpush1.msra.mxu0 0.0
        %1465 = vmatprep.subr.mxu0 0.0
        %1466 = vmatpush1.msra.mxu0 0.0
        %1467 = vmatprep.subr.mxu0 0.0
        %1468 = vmatpush1.msra.mxu0 0.0
        %1469 = vmatprep.subr.mxu0 0.0
        %1470 = vmatpush1.msra.mxu0 0.0
        %1471 = vmatprep.subr.mxu0 0.0
        %1472 = vmatpush1.msra.mxu0 0.0
        %1473 = vmatprep.subr.mxu0 0.0
        %1474 = vmatpush1.msra.mxu0 0.0
        %1475 = vmatprep.subr.mxu0 0.0
        %1476 = vmatpush1.msra.mxu0 0.0
        %1477 = vmatprep.subr.mxu0 0.0
        %1478 = vmatpush1.msra.mxu0 0.0
        %1479 = vmatprep.subr.mxu0 0.0
        %1480 = vmatpush1.msra.mxu0 0.0
        %1481 = vmatprep.subr.mxu0 0.0
        %1482 = vmatpush1.msra.mxu0 0.0
        %1483 = vmatprep.mubr.f32.mxu0 0.0
        %1484 = vmatmul.mubr.f32.gmra.mrb[0].mxu0 %v1414
        %v1485 = vpop.f32.mrb[0].mxu0
        %v1486 = vadd.f32 %v1406, %v1485
        %v1487 = vpop.f32.mrb[0].mxu0
        %1488 = vmatprep.mubr.f32.mxu0 0.0
        %1489 = vmatmul.mubr.f32.gmra.mrb[0].mxu0 %v1417
        %v1490 = vpop.f32.mrb[0].mxu0
        %v1491 = vadd.f32 %v1411, %v1490
        %v1492 = vpop.f32.mrb[0].mxu0
        %1493 = vdwg.mxu0
        %v1494 = vxor.u32 %v1486, 2147483648
        %v1495 = vxor.u32 %v1491, 2147483648
        %v1496 = vmul.f32 %v1494, 1.442695
        %v1497 = vpow.pop %v1496
        %v1498 = vmul.f32 %v1495, 1.442695
        %v1499 = vpow.pop %v1498
        %v1500 = vadd.f32 %v1497, 1.0
        %v1501 = vadd.f32 %v1499, 1.0
        %v1502 = vrcp.pop %v1500
        %v1503 = vmul.f32 1.0, %v1502
        %v1504 = vrcp.pop %v1501
        %v1505 = vmul.f32 1.0, %v1504
        %v1506 = vmul.f32 %v1397, %v1503
        %v1507 = vmul.f32 %v1398, %v1505
        %v1508 = vmul.f32 %v1506, %v1017
        %v1509 = vmul.f32 %v1507, %v1022
        %v1510 = vadd.f32 %v747, %v1508
        %v1511 = vadd.f32 %v748, %v1509
        %1512 = vst [vmem:[%s709] sm:$0xff] %v1510
        %1513 = vst [vmem:[%s709 + $0x8] sm:$0xff] %v1511
        %1514 = vst [vmem:[#allocation2 + $0x20] sm:$0xff] %v1510
        %1515 = vst [vmem:[#allocation2 + $0x28] sm:$0xff] %v1511
        %v1516 = vld [vmem:[%s11] sm:$0xff]
        %v1517 = vld [vmem:[%s11 + $0x8] sm:$0xff]
        %v1518 = vld [vmem:[%s11 + $0x10] sm:$0xff]
        %v1519 = vld [vmem:[%s11 + $0x18] sm:$0xff]
        %v1520 = vld [vmem:[%s11 + $0x20] sm:$0xff]
        %v1521 = vld [vmem:[%s11 + $0x28] sm:$0xff]
        %v1522 = vld [vmem:[%s11 + $0x30] sm:$0xff]
        %v1523 = vld [vmem:[%s11 + $0x38] sm:$0xff]
        %v1524 = vld [vmem:[#allocation2] sm:$0xff]
        %v1525 = vld [vmem:[#allocation2 + $0x8] sm:$0xff]
        %v1526 = vld [vmem:[#allocation2 + $0x10] sm:$0xff]
        %v1527 = vld [vmem:[#allocation2 + $0x18] sm:$0xff]
        %v1528 = vld [vmem:[#allocation2 + $0x20] sm:$0xff]
        %v1529 = vld [vmem:[#allocation2 + $0x28] sm:$0xff]
        %v1530 = vld [vmem:[%s12] sm:$0xff]
        %v1531 = vld [vmem:[%s12 + $0x8] sm:$0xff]
        %v1532 = vld [vmem:[%s12 + $0x10] sm:$0xff]
        %v1533 = vld [vmem:[%s12 + $0x18] sm:$0xff]
        %v1534 = vld [vmem:[%s12 + $0x20] sm:$0xff]
        %v1535 = vld [vmem:[%s12 + $0x28] sm:$0xff]
        %v1536 = vld [vmem:[%s12 + $0x30] sm:$0xff]
        %v1537 = vld [vmem:[%s12 + $0x38] sm:$0xff]
        %1539 = vset.pattern.permute.xlu0 0
        %1540 = vperm.xlu0 %1539, %v1530
        %v1541 = vpop.permute.xlu0 %1540
        %1544 = vset.pattern.permute.xlu0 0
        %1545 = vperm.xlu0 %1544, %v1531
        %v1546 = vpop.permute.xlu0 %1545
        %1549 = vset.pattern.permute.xlu0 0
        %1550 = vperm.xlu0 %1549, %v1532
        %v1551 = vpop.permute.xlu0 %1550
        %1554 = vset.pattern.permute.xlu0 0
        %1555 = vperm.xlu0 %1554, %v1533
        %v1556 = vpop.permute.xlu0 %1555
        %1559 = vset.pattern.permute.xlu0 0
        %1560 = vperm.xlu0 %1559, %v1534
        %v1561 = vpop.permute.xlu0 %1560
        %1564 = vset.pattern.permute.xlu0 0
        %1565 = vperm.xlu0 %1564, %v1535
        %v1566 = vpop.permute.xlu0 %1565
        %1569 = vset.pattern.permute.xlu0 0
        %1570 = vperm.xlu0 %1569, %v1536
        %v1571 = vpop.permute.xlu0 %1570
        %1574 = vset.pattern.permute.xlu0 0
        %1575 = vperm.xlu0 %1574, %v1537
        %v1576 = vpop.permute.xlu0 %1575
        %v1579 = vsel %vm1103, %v1516, 0
        %v1582 = vsel %vm1103, %v1517, 0
        %v1585 = vsel %vm1103, %v1518, 0
        %v1588 = vsel %vm1103, %v1519, 0
        %v1591 = vsel %vm1103, %v1520, 0
        %v1594 = vsel %vm1103, %v1521, 0
        %v1597 = vsel %vm1103, %v1522, 0
        %v1600 = vsel %vm1103, %v1523, 0
        %1602 = vmatprep.subr.mxu0 0.0
        %1603 = vmatpush1.msra.mxu0 %v1524
        %1604 = vmatprep.subr.mxu0 0.0
        %1605 = vmatpush1.msra.mxu0 %v1525
        %1606 = vmatprep.subr.mxu0 0.0
        %1607 = vmatpush1.msra.mxu0 %v1526
        %1608 = vmatprep.subr.mxu0 0.0
        %1609 = vmatpush1.msra.mxu0 %v1527
        %1610 = vmatprep.subr.mxu0 0.0
        %1611 = vmatpush1.msra.mxu0 %v1528
        %1612 = vmatprep.subr.mxu0 0.0
        %1613 = vmatpush1.msra.mxu0 %v1529
        %1614 = vmatprep.subr.mxu0 0.0
        %1615 = vmatpush1.msra.mxu0 0.0
        %1616 = vmatprep.subr.mxu0 0.0
        %1617 = vmatpush1.msra.mxu0 0.0
        %1618 = vmatprep.subr.mxu0 0.0
        %1619 = vmatpush1.msra.mxu0 0.0
        %1620 = vmatprep.subr.mxu0 0.0
        %1621 = vmatpush1.msra.mxu0 0.0
        %1622 = vmatprep.subr.mxu0 0.0
        %1623 = vmatpush1.msra.mxu0 0.0
        %1624 = vmatprep.subr.mxu0 0.0
        %1625 = vmatpush1.msra.mxu0 0.0
        %1626 = vmatprep.subr.mxu0 0.0
        %1627 = vmatpush1.msra.mxu0 0.0
        %1628 = vmatprep.subr.mxu0 0.0
        %1629 = vmatpush1.msra.mxu0 0.0
        %1630 = vmatprep.subr.mxu0 0.0
        %1631 = vmatpush1.msra.mxu0 0.0
        %1632 = vmatprep.subr.mxu0 0.0
        %1633 = vmatpush1.msra.mxu0 0.0
        %1634 = vmatprep.subr.mxu0 0.0
        %1635 = vmatpush1.msra.mxu0 0.0
        %1636 = vmatprep.subr.mxu0 0.0
        %1637 = vmatpush1.msra.mxu0 0.0
        %1638 = vmatprep.subr.mxu0 0.0
        %1639 = vmatpush1.msra.mxu0 0.0
        %1640 = vmatprep.subr.mxu0 0.0
        %1641 = vmatpush1.msra.mxu0 0.0
        %1642 = vmatprep.subr.mxu0 0.0
        %1643 = vmatpush1.msra.mxu0 0.0
        %1644 = vmatprep.subr.mxu0 0.0
        %1645 = vmatpush1.msra.mxu0 0.0
        %1646 = vmatprep.subr.mxu0 0.0
        %1647 = vmatpush1.msra.mxu0 0.0
        %1648 = vmatprep.subr.mxu0 0.0
        %1649 = vmatpush1.msra.mxu0 0.0
        %1650 = vmatprep.subr.mxu0 0.0
        %1651 = vmatpush1.msra.mxu0 0.0
        %1652 = vmatprep.subr.mxu0 0.0
        %1653 = vmatpush1.msra.mxu0 0.0
        %1654 = vmatprep.subr.mxu0 0.0
        %1655 = vmatpush1.msra.mxu0 0.0
        %1656 = vmatprep.subr.mxu0 0.0
        %1657 = vmatpush1.msra.mxu0 0.0
        %1658 = vmatprep.subr.mxu0 0.0
        %1659 = vmatpush1.msra.mxu0 0.0
        %1660 = vmatprep.subr.mxu0 0.0
        %1661 = vmatpush1.msra.mxu0 0.0
        %1662 = vmatprep.subr.mxu0 0.0
        %1663 = vmatpush1.msra.mxu0 0.0
        %1664 = vmatprep.subr.mxu0 0.0
        %1665 = vmatpush1.msra.mxu0 0.0
        %1666 = vmatprep.mubr.f32.mxu0 0.0
        %1667 = vmatmul.mubr.f32.gmra.mrb[0].mxu0 %v1579
        %v1668 = vpop.f32.mrb[0].mxu0
        %v1669 = vadd.f32 %v1541, %v1668
        %v1670 = vpop.f32.mrb[0].mxu0
        %1671 = vmatprep.mubr.f32.mxu0 0.0
        %1672 = vmatmul.mubr.f32.gmra.mrb[0].mxu0 %v1582
        %v1673 = vpop.f32.mrb[0].mxu0
        %v1674 = vadd.f32 %v1546, %v1673
        %v1675 = vpop.f32.mrb[0].mxu0
        %1676 = vmatprep.mubr.f32.mxu0 0.0
        %1677 = vmatmul.mubr.f32.gmra.mrb[0].mxu0 %v1585
        %v1678 = vpop.f32.mrb[0].mxu0
        %v1679 = vadd.f32 %v1551, %v1678
        %v1680 = vpop.f32.mrb[0].mxu0
        %1681 = vmatprep.mubr.f32.mxu0 0.0
        %1682 = vmatmul.mubr.f32.gmra.mrb[0].mxu0 %v1588
        %v1683 = vpop.f32.mrb[0].mxu0
        %v1684 = vadd.f32 %v1556, %v1683
        %v1685 = vpop.f32.mrb[0].mxu0
        %1686 = vmatprep.mubr.f32.mxu0 0.0
        %1687 = vmatmul.mubr.f32.gmra.mrb[0].mxu0 %v1591
        %v1688 = vpop.f32.mrb[0].mxu0
        %v1689 = vadd.f32 %v1561, %v1688
        %v1690 = vpop.f32.mrb[0].mxu0
        %1691 = vmatprep.mubr.f32.mxu0 0.0
        %1692 = vmatmul.mubr.f32.gmra.mrb[0].mxu0 %v1594
        %v1693 = vpop.f32.mrb[0].mxu0
        %v1694 = vadd.f32 %v1566, %v1693
        %v1695 = vpop.f32.mrb[0].mxu0
        %1696 = vmatprep.mubr.f32.mxu0 0.0
        %1697 = vmatmul.mubr.f32.gmra.mrb[0].mxu0 %v1597
        %v1698 = vpop.f32.mrb[0].mxu0
        %v1699 = vadd.f32 %v1571, %v1698
        %v1700 = vpop.f32.mrb[0].mxu0
        %1701 = vmatprep.mubr.f32.mxu0 0.0
        %1702 = vmatmul.mubr.f32.gmra.mrb[0].mxu0 %v1600
        %v1703 = vpop.f32.mrb[0].mxu0
        %v1704 = vadd.f32 %v1576, %v1703
        %v1705 = vpop.f32.mrb[0].mxu0
        %1706 = vdwg.mxu0
        %v1707 = vxor.u32 %v1669, 2147483648
        %v1708 = vxor.u32 %v1674, 2147483648
        %v1709 = vxor.u32 %v1679, 2147483648
        %v1710 = vxor.u32 %v1684, 2147483648
        %v1711 = vxor.u32 %v1689, 2147483648
        %v1712 = vxor.u32 %v1694, 2147483648
        %v1713 = vxor.u32 %v1699, 2147483648
        %v1714 = vxor.u32 %v1704, 2147483648
        %v1715 = vmul.f32 %v1707, 1.442695
        %v1716 = vpow.pop %v1715
        %v1717 = vmul.f32 %v1708, 1.442695
        %v1718 = vpow.pop %v1717
        %v1719 = vmul.f32 %v1709, 1.442695
        %v1720 = vpow.pop %v1719
        %v1721 = vmul.f32 %v1710, 1.442695
        %v1722 = vpow.pop %v1721
        %v1723 = vmul.f32 %v1711, 1.442695
        %v1724 = vpow.pop %v1723
        %v1725 = vmul.f32 %v1712, 1.442695
        %v1726 = vpow.pop %v1725
        %v1727 = vmul.f32 %v1713, 1.442695
        %v1728 = vpow.pop %v1727
        %v1729 = vmul.f32 %v1714, 1.442695
        %v1730 = vpow.pop %v1729
        %v1731 = vadd.f32 %v1716, 1.0
        %v1732 = vadd.f32 %v1718, 1.0
        %v1733 = vadd.f32 %v1720, 1.0
        %v1734 = vadd.f32 %v1722, 1.0
        %v1735 = vadd.f32 %v1724, 1.0
        %v1736 = vadd.f32 %v1726, 1.0
        %v1737 = vadd.f32 %v1728, 1.0
        %v1738 = vadd.f32 %v1730, 1.0
        %v1739 = vrcp.pop %v1731
        %v1740 = vmul.f32 1.0, %v1739
        %v1741 = vrcp.pop %v1732
        %v1742 = vmul.f32 1.0, %v1741
        %v1743 = vrcp.pop %v1733
        %v1744 = vmul.f32 1.0, %v1743
        %v1745 = vrcp.pop %v1734
        %v1746 = vmul.f32 1.0, %v1745
        %v1747 = vrcp.pop %v1735
        %v1748 = vmul.f32 1.0, %v1747
        %v1749 = vrcp.pop %v1736
        %v1750 = vmul.f32 1.0, %v1749
        %v1751 = vrcp.pop %v1737
        %v1752 = vmul.f32 1.0, %v1751
        %v1753 = vrcp.pop %v1738
        %v1754 = vmul.f32 1.0, %v1753
        %v1755 = vmul.f32 %v1669, %v1740
        %v1756 = vmul.f32 %v1674, %v1742
        %v1757 = vmul.f32 %v1679, %v1744
        %v1758 = vmul.f32 %v1684, %v1746
        %v1759 = vmul.f32 %v1689, %v1748
        %v1760 = vmul.f32 %v1694, %v1750
        %v1761 = vmul.f32 %v1699, %v1752
        %v1762 = vmul.f32 %v1704, %v1754
        %v1763 = vld [vmem:[%s13] sm:$0xff]
        %v1764 = vld [vmem:[%s13 + $0x8] sm:$0xff]
        %v1765 = vld [vmem:[%s14] sm:$0xff]
        %v1766 = vld [vmem:[%s14 + $0x8] sm:$0xff]
        %1768 = vset.pattern.permute.xlu0 0
        %1769 = vperm.xlu0 %1768, %v1765
        %v1770 = vpop.permute.xlu0 %1769
        %1773 = vset.pattern.permute.xlu0 0
        %1774 = vperm.xlu0 %1773, %v1766
        %v1775 = vpop.permute.xlu0 %1774
        %v1778 = vsel %vm1303, %v1763, 0
        %v1781 = vsel %vm1303, %v1764, 0
        %1783 = vmatprep.subr.mxu0 0.0
        %1784 = vmatpush1.msra.mxu0 %v1755
        %1785 = vmatprep.subr.mxu0 0.0
        %1786 = vmatpush1.msra.mxu0 %v1756
        %1787 = vmatprep.subr.mxu0 0.0
        %1788 = vmatpush1.msra.mxu0 %v1757
        %1789 = vmatprep.subr.mxu0 0.0
        %1790 = vmatpush1.msra.mxu0 %v1758
        %1791 = vmatprep.subr.mxu0 0.0
        %1792 = vmatpush1.msra.mxu0 0.0
        %1793 = vmatprep.subr.mxu0 0.0
        %1794 = vmatpush1.msra.mxu0 0.0
        %1795 = vmatprep.subr.mxu0 0.0
        %1796 = vmatpush1.msra.mxu0 0.0
        %1797 = vmatprep.subr.mxu0 0.0
        %1798 = vmatpush1.msra.mxu0 0.0
        %1799 = vmatprep.subr.mxu0 0.0
        %1800 = vmatpush1.msra.mxu0 0.0
        %1801 = vmatprep.subr.mxu0 0.0
        %1802 = vmatpush1.msra.mxu0 0.0
        %1803 = vmatprep.subr.mxu0 0.0
        %1804 = vmatpush1.msra.mxu0 0.0
        %1805 = vmatprep.subr.mxu0 0.0
        %1806 = vmatpush1.msra.mxu0 0.0
        %1807 = vmatprep.subr.mxu0 0.0
        %1808 = vmatpush1.msra.mxu0 0.0
        %1809 = vmatprep.subr.mxu0 0.0
        %1810 = vmatpush1.msra.mxu0 0.0
        %1811 = vmatprep.subr.mxu0 0.0
        %1812 = vmatpush1.msra.mxu0 0.0
        %1813 = vmatprep.subr.mxu0 0.0
        %1814 = vmatpush1.msra.mxu0 0.0
        %1815 = vmatprep.subr.mxu0 0.0
        %1816 = vmatpush1.msra.mxu0 0.0
        %1817 = vmatprep.subr.mxu0 0.0
        %1818 = vmatpush1.msra.mxu0 0.0
        %1819 = vmatprep.subr.mxu0 0.0
        %1820 = vmatpush1.msra.mxu0 0.0
        %1821 = vmatprep.subr.mxu0 0.0
        %1822 = vmatpush1.msra.mxu0 0.0
        %1823 = vmatprep.subr.mxu0 0.0
        %1824 = vmatpush1.msra.mxu0 0.0
        %1825 = vmatprep.subr.mxu0 0.0
        %1826 = vmatpush1.msra.mxu0 0.0
        %1827 = vmatprep.subr.mxu0 0.0
        %1828 = vmatpush1.msra.mxu0 0.0
        %1829 = vmatprep.subr.mxu0 0.0
        %1830 = vmatpush1.msra.mxu0 0.0
        %1831 = vmatprep.subr.mxu0 0.0
        %1832 = vmatpush1.msra.mxu0 0.0
        %1833 = vmatprep.subr.mxu0 0.0
        %1834 = vmatpush1.msra.mxu0 0.0
        %1835 = vmatprep.subr.mxu0 0.0
        %1836 = vmatpush1.msra.mxu0 0.0
        %1837 = vmatprep.subr.mxu0 0.0
        %1838 = vmatpush1.msra.mxu0 0.0
        %1839 = vmatprep.subr.mxu0 0.0
        %1840 = vmatpush1.msra.mxu0 0.0
        %1841 = vmatprep.subr.mxu0 0.0
        %1842 = vmatpush1.msra.mxu0 0.0
        %1843 = vmatprep.subr.mxu0 0.0
        %1844 = vmatpush1.msra.mxu0 0.0
        %1845 = vmatprep.subr.mxu0 0.0
        %1846 = vmatpush1.msra.mxu0 0.0
        %1847 = vmatprep.mubr.f32.mxu0 0.0
        %1848 = vmatmul.mubr.f32.gmra.mrb[0].mxu0 %v1778
        %v1849 = vpop.f32.mrb[0].mxu0
        %v1850 = vadd.f32 %v1770, %v1849
        %v1851 = vpop.f32.mrb[0].mxu0
        %1852 = vmatprep.mubr.f32.mxu0 0.0
        %1853 = vmatmul.mubr.f32.gmra.mrb[0].mxu0 %v1781
        %v1854 = vpop.f32.mrb[0].mxu0
        %v1855 = vadd.f32 %v1775, %v1854
        %v1856 = vpop.f32.mrb[0].mxu0
        %1857 = vdwg.mxu0
        %v1858 = vxor.u32 %v1850, 2147483648
        %v1859 = vxor.u32 %v1855, 2147483648
        %v1860 = vmul.f32 %v1858, 1.442695
        %v1861 = vpow.pop %v1860
        %v1862 = vmul.f32 %v1859, 1.442695
        %v1863 = vpow.pop %v1862
        %v1864 = vadd.f32 %v1861, 1.0
        %v1865 = vadd.f32 %v1863, 1.0
        %v1866 = vrcp.pop %v1864
        %v1867 = vmul.f32 1.0, %v1866
        %v1868 = vrcp.pop %v1865
        %v1869 = vmul.f32 1.0, %v1868
        %v1870 = vmul.f32 %v1850, %v1867
        %v1871 = vmul.f32 %v1855, %v1869
        %v1872 = vld [vmem:[%s15] sm:$0xff]
        %v1873 = vld [vmem:[%s15 + $0x8] sm:$0xff]
        %v1874 = vld [vmem:[%s16] sm:$0xff]
        %v1875 = vld [vmem:[%s16 + $0x8] sm:$0xff]
        %1877 = vset.pattern.permute.xlu0 0
        %1878 = vperm.xlu0 %1877, %v1874
        %v1879 = vpop.permute.xlu0 %1878
        %1882 = vset.pattern.permute.xlu0 0
        %1883 = vperm.xlu0 %1882, %v1875
        %v1884 = vpop.permute.xlu0 %1883
        %v1887 = vsel %vm1303, %v1872, 0
        %v1890 = vsel %vm1303, %v1873, 0
        %1892 = vmatprep.subr.mxu0 0.0
        %1893 = vmatpush1.msra.mxu0 %v1759
        %1894 = vmatprep.subr.mxu0 0.0
        %1895 = vmatpush1.msra.mxu0 %v1760
        %1896 = vmatprep.subr.mxu0 0.0
        %1897 = vmatpush1.msra.mxu0 %v1761
        %1898 = vmatprep.subr.mxu0 0.0
        %1899 = vmatpush1.msra.mxu0 %v1762
        %1900 = vmatprep.subr.mxu0 0.0
        %1901 = vmatpush1.msra.mxu0 0.0
        %1902 = vmatprep.subr.mxu0 0.0
        %1903 = vmatpush1.msra.mxu0 0.0
        %1904 = vmatprep.subr.mxu0 0.0
        %1905 = vmatpush1.msra.mxu0 0.0
        %1906 = vmatprep.subr.mxu0 0.0
        %1907 = vmatpush1.msra.mxu0 0.0
        %1908 = vmatprep.subr.mxu0 0.0
        %1909 = vmatpush1.msra.mxu0 0.0
        %1910 = vmatprep.subr.mxu0 0.0
        %1911 = vmatpush1.msra.mxu0 0.0
        %1912 = vmatprep.subr.mxu0 0.0
        %1913 = vmatpush1.msra.mxu0 0.0
        %1914 = vmatprep.subr.mxu0 0.0
        %1915 = vmatpush1.msra.mxu0 0.0
        %1916 = vmatprep.subr.mxu0 0.0
        %1917 = vmatpush1.msra.mxu0 0.0
        %1918 = vmatprep.subr.mxu0 0.0
        %1919 = vmatpush1.msra.mxu0 0.0
        %1920 = vmatprep.subr.mxu0 0.0
        %1921 = vmatpush1.msra.mxu0 0.0
        %1922 = vmatprep.subr.mxu0 0.0
        %1923 = vmatpush1.msra.mxu0 0.0
        %1924 = vmatprep.subr.mxu0 0.0
        %1925 = vmatpush1.msra.mxu0 0.0
        %1926 = vmatprep.subr.mxu0 0.0
        %1927 = vmatpush1.msra.mxu0 0.0
        %1928 = vmatprep.subr.mxu0 0.0
        %1929 = vmatpush1.msra.mxu0 0.0
        %1930 = vmatprep.subr.mxu0 0.0
        %1931 = vmatpush1.msra.mxu0 0.0
        %1932 = vmatprep.subr.mxu0 0.0
        %1933 = vmatpush1.msra.mxu0 0.0
        %1934 = vmatprep.subr.mxu0 0.0
        %1935 = vmatpush1.msra.mxu0 0.0
        %1936 = vmatprep.subr.mxu0 0.0
        %1937 = vmatpush1.msra.mxu0 0.0
        %1938 = vmatprep.subr.mxu0 0.0
        %1939 = vmatpush1.msra.mxu0 0.0
        %1940 = vmatprep.subr.mxu0 0.0
        %1941 = vmatpush1.msra.mxu0 0.0
        %1942 = vmatprep.subr.mxu0 0.0
        %1943 = vmatpush1.msra.mxu0 0.0
        %1944 = vmatprep.subr.mxu0 0.0
        %1945 = vmatpush1.msra.mxu0 0.0
        %1946 = vmatprep.subr.mxu0 0.0
        %1947 = vmatpush1.msra.mxu0 0.0
        %1948 = vmatprep.subr.mxu0 0.0
        %1949 = vmatpush1.msra.mxu0 0.0
        %1950 = vmatprep.subr.mxu0 0.0
        %1951 = vmatpush1.msra.mxu0 0.0
        %1952 = vmatprep.subr.mxu0 0.0
        %1953 = vmatpush1.msra.mxu0 0.0
        %1954 = vmatprep.subr.mxu0 0.0
        %1955 = vmatpush1.msra.mxu0 0.0
        %1956 = vmatprep.mubr.f32.mxu0 0.0
        %1957 = vmatmul.mubr.f32.gmra.mrb[0].mxu0 %v1887
        %v1958 = vpop.f32.mrb[0].mxu0
        %v1959 = vadd.f32 %v1879, %v1958
        %v1960 = vpop.f32.mrb[0].mxu0
        %1961 = vmatprep.mubr.f32.mxu0 0.0
        %1962 = vmatmul.mubr.f32.gmra.mrb[0].mxu0 %v1890
        %v1963 = vpop.f32.mrb[0].mxu0
        %v1964 = vadd.f32 %v1884, %v1963
        %v1965 = vpop.f32.mrb[0].mxu0
        %1966 = vdwg.mxu0
        %v1967 = vxor.u32 %v1959, 2147483648
        %v1968 = vxor.u32 %v1964, 2147483648
        %v1969 = vmul.f32 %v1967, 1.442695
        %v1970 = vpow.pop %v1969
        %v1971 = vmul.f32 %v1968, 1.442695
        %v1972 = vpow.pop %v1971
        %v1973 = vadd.f32 %v1970, 1.0
        %v1974 = vadd.f32 %v1972, 1.0
        %v1975 = vrcp.pop %v1973
        %v1976 = vmul.f32 1.0, %v1975
        %v1977 = vrcp.pop %v1974
        %v1978 = vmul.f32 1.0, %v1977
        %v1979 = vmul.f32 %v1870, %v1976
        %v1980 = vmul.f32 %v1871, %v1978
        %v1981 = vmul.f32 %v1979, %v1027
        %v1982 = vmul.f32 %v1980, %v1032
        %1983 = vmatprep.subr.mxu0 0.0
        %1984 = vmatpush1.xpose.msra.mxu0 %v774
        %1985 = vmatprep.subr.mxu0 0.0
        %1986 = vmatpush1.xpose.msra.mxu0 %v775
        %1987 = vmatprep.subr.mxu0 0.0
        %1988 = vmatpush1.xpose.msra.mxu0 0.0
        %1989 = vmatprep.subr.mxu0 0.0
        %1990 = vmatpush1.xpose.msra.mxu0 0.0
        %1991 = vmatprep.subr.mxu0 0.0
        %1992 = vmatpush1.xpose.msra.mxu0 0.0
        %1993 = vmatprep.subr.mxu0 0.0
        %1994 = vmatpush1.xpose.msra.mxu0 0.0
        %1995 = vmatprep.subr.mxu0 0.0
        %1996 = vmatpush1.xpose.msra.mxu0 0.0
        %1997 = vmatprep.subr.mxu0 0.0
        %1998 = vmatpush1.xpose.msra.mxu0 0.0
        %1999 = vmatprep.subr.mxu0 0.0
        %2000 = vmatpush1.xpose.msra.mxu0 0.0
        %2001 = vmatprep.subr.mxu0 0.0
        %2002 = vmatpush1.xpose.msra.mxu0 0.0
        %2003 = vmatprep.subr.mxu0 0.0
        %2004 = vmatpush1.xpose.msra.mxu0 0.0
        %2005 = vmatprep.subr.mxu0 0.0
        %2006 = vmatpush1.xpose.msra.mxu0 0.0
        %2007 = vmatprep.subr.mxu0 0.0
        %2008 = vmatpush1.xpose.msra.mxu0 0.0
        %2009 = vmatprep.subr.mxu0 0.0
        %2010 = vmatpush1.xpose.msra.mxu0 0.0
        %2011 = vmatprep.subr.mxu0 0.0
        %2012 = vmatpush1.xpose.msra.mxu0 0.0
        %2013 = vmatprep.subr.mxu0 0.0
        %2014 = vmatpush1.xpose.msra.mxu0 0.0
        %2015 = vmatprep.subr.mxu0 0.0
        %2016 = vmatpush1.xpose.msra.mxu0 0.0
        %2017 = vmatprep.subr.mxu0 0.0
        %2018 = vmatpush1.xpose.msra.mxu0 0.0
        %2019 = vmatprep.subr.mxu0 0.0
        %2020 = vmatpush1.xpose.msra.mxu0 0.0
        %2021 = vmatprep.subr.mxu0 0.0
        %2022 = vmatpush1.xpose.msra.mxu0 0.0
        %2023 = vmatprep.subr.mxu0 0.0
        %2024 = vmatpush1.xpose.msra.mxu0 0.0
        %2025 = vmatprep.subr.mxu0 0.0
        %2026 = vmatpush1.xpose.msra.mxu0 0.0
        %2027 = vmatprep.subr.mxu0 0.0
        %2028 = vmatpush1.xpose.msra.mxu0 0.0
        %2029 = vmatprep.subr.mxu0 0.0
        %2030 = vmatpush1.xpose.msra.mxu0 0.0
        %2031 = vmatprep.subr.mxu0 0.0
        %2032 = vmatpush1.xpose.msra.mxu0 0.0
        %2033 = vmatprep.subr.mxu0 0.0
        %2034 = vmatpush1.xpose.msra.mxu0 0.0
        %2035 = vmatprep.subr.mxu0 0.0
        %2036 = vmatpush1.xpose.msra.mxu0 0.0
        %2037 = vmatprep.subr.mxu0 0.0
        %2038 = vmatpush1.xpose.msra.mxu0 0.0
        %2039 = vmatprep.subr.mxu0 0.0
        %2040 = vmatpush1.xpose.msra.mxu0 0.0
        %2041 = vmatprep.subr.mxu0 0.0
        %2042 = vmatpush1.xpose.msra.mxu0 0.0
        %2043 = vmatprep.subr.mxu0 0.0
        %2044 = vmatpush1.xpose.msra.mxu0 0.0
        %2045 = vmatprep.subr.mxu0 0.0
        %2046 = vmatpush1.xpose.msra.mxu0 0.0
        %2047 = vmatprep.mubr.f32.mxu0 0.0
        %2048 = vmatmul.mubr.f32.gmra.mrb[0].mxu0 %v1981
        %v2049 = vpop.f32.mrb[0].mxu0
        %v2050 = vadd.f32 0.0, %v2049
        %v2051 = vpop.f32.mrb[0].mxu0
        %2052 = vmatprep.mubr.f32.mxu0 0.0
        %2053 = vmatmul.mubr.f32.gmra.mrb[0].mxu0 %v1982
        %v2054 = vpop.f32.mrb[0].mxu0
        %v2055 = vadd.f32 0.0, %v2054
        %v2056 = vpop.f32.mrb[0].mxu0
        %2057 = vdwg.mxu0
        %v2058 = vld [vmem:[%s716] sm:$0xff]
        %v2059 = vld [vmem:[%s716 + $0x8] sm:$0xff]
        %v2060 = vadd.f32 %v2058, %v2050
        %v2061 = vadd.f32 %v2059, %v2055
        %2062 = vst.msk [vmem:[%s716] sm:$0xff] %vm776, %v2060
        %2063 = vst.msk [vmem:[%s716 + $0x8] sm:$0xff] %vm776, %v2061
        %s2064 = sand.u32 %s465, 1
        %s2065 = scalar_lea.sflag [#allocation6], %s2064
        %s2066 = sand.u32 %s465, 1
        %s2067 = smul.addr %s2066, 16
        %s2068 = scalar_lea.vmem [#allocation5], %s2067
        %s2069 = sand.u32 %s491, 1
        %s2070 = scalar_lea.sflag [#allocation8], %s2069
        %s2071 = sand.u32 %s491, 1
        %s2072 = smul.addr %s2071, 16
        %s2073 = scalar_lea.vmem [#allocation7], %s2072
        // Predicated region
        $region135: #{tpu_custom_call.1} parent=125 // pred_check
          %p2074 = pneg %p475
        $region136: #{tpu_custom_call.1} parent=125 // pred_check_branch
          %2076 = sbr.rel (%p2074) target = $region138
        $region137: #{tpu_custom_call.1} parent=125 // pred_region
          %s2077 = sadd.s32 %s41, %s42
          %s2079 = ssub.s32 256, 256
          %2080 = vsyncadd %s2065, %s2079
          %s2081 = smul.addr %s2077, 128
          %s2082 = scalar_lea.hbm %s18, %s2081
          %s2083 = sshll.u32 %s2068, 4
          %s2084 = int_to_ptr.vmem [resolvable:$true] %s2083
          %2089 = dma.vmem_to_hbm [thread:$0]  %s2084, 256, %s2082, %s2065, 128, 256, 8
        $region138: #{tpu_custom_call.1} parent=125 // pred_fallthru
          _
        // Predicated region
        $region139: #{tpu_custom_call.1} parent=125 // pred_check
          %p2090 = pneg %p501
        $region140: #{tpu_custom_call.1} parent=125 // pred_check_branch
          %2092 = sbr.rel (%p2090) target = $region142
        $region141: #{tpu_custom_call.1} parent=125 // pred_region
          %s2094 = ssub.s32 256, 256
          %2095 = vsyncadd %s2070, %s2094
          %s2096 = smul.addr %s41, 2
          %s2097 = smul.addr %s2096, 128
          %s2098 = scalar_lea.hbm %s19, %s2097
          %s2099 = sshll.u32 %s2073, 4
          %s2100 = int_to_ptr.vmem [resolvable:$true] %s2099
          %2105 = dma.vmem_to_hbm [thread:$0]  %s2100, 256, %s2098, %s2070, 128, 128, 8
        $region142: #{tpu_custom_call.1} parent=125 // pred_fallthru
          _
      $region126: #{tpu_custom_call.1} parent=5 // pred_fallthru
        _
      %p2106 = scmp.le.s32.totalorder 2, %s32
      // Predicated region
      $region143: #{tpu_custom_call.1} parent=5 // pred_check
        %p2107 = pneg %p2106
      $region144: #{tpu_custom_call.1} parent=5 // pred_check_branch
        %2109 = sbr.rel (%p2107) target = $region146
      $region145: #{tpu_custom_call.1} parent=5 // pred_region
        %s2110 = ssub.s32 %s32, 2
        // Predicated region
        $region147: #{tpu_custom_call.1} parent=145 // pred_check
          %p2111 = pneg %p481
        $region148: #{tpu_custom_call.1} parent=145 // pred_check_branch
          %2113 = sbr.rel (%p2111) target = $region150
        $region149: #{tpu_custom_call.1} parent=145 // pred_region
          %s2114 = sand.u32 %s466, 1
          %s2115 = scalar_lea.sflag [#allocation6], %s2114
          %s2116 = sand.u32 %s466, 1
          %s2117 = smul.addr %s2116, 16
          %s2118 = scalar_lea.vmem [#allocation5], %s2117
          %2119 = dma.done %s2115, 256
        $region150: #{tpu_custom_call.1} parent=145 // pred_fallthru
          _
        // Predicated region
        $region151: #{tpu_custom_call.1} parent=145 // pred_check
          %p2120 = pneg %p507
        $region152: #{tpu_custom_call.1} parent=145 // pred_check_branch
          %2122 = sbr.rel (%p2120) target = $region154
        $region153: #{tpu_custom_call.1} parent=145 // pred_region
          %s2123 = sand.u32 %s492, 1
          %s2124 = scalar_lea.sflag [#allocation8], %s2123
          %s2125 = sand.u32 %s492, 1
          %s2126 = smul.addr %s2125, 16
          %s2127 = scalar_lea.vmem [#allocation7], %s2126
          %2128 = dma.done %s2124, 256
        $region154: #{tpu_custom_call.1} parent=145 // pred_fallthru
          _
      $region146: #{tpu_custom_call.1} parent=5 // pred_fallthru
        _
    $region6: #{tpu_custom_call.1} parent=1 // loop_footer
      %s36 = sadd.s32 1, %s32
    $region7: #{tpu_custom_call.1} parent=1 // loop_footer_branch
      %31 = sbr.rel target = $region3
    $region8: #{tpu_custom_call.1} parent=1 // loop_exit
      _
    %2129 = vsyncpa [#allocation6], 1
    %s2130 = scalar_lea.sflag [#allocation6], 1
    %2131 = vsyncpa %s2130, 1
    %2132 = vsyncpa [#allocation8], 1
    %s2133 = scalar_lea.sflag [#allocation8], 1
    %2134 = vsyncpa %s2133, 1

</llo_original>
